<compile_context>
chip_gen: v7x
topology: tpu7x:2x2x1
jax: 0.10.0
libtpu: 0.0.40
codegen_flags: <defaults>
</compile_context>

<pallas_src>
import functools

import jax
import jax.numpy as jnp
from jax import lax
from jax.experimental import pallas as pl
from jax.experimental.pallas import tpu as pltpu


def _round_up(x, m):
    return (x + m - 1) // m * m


def _choose_batch_tile(n):
    """Sublane-aligned batch tile; >=2 grid tiles when N allows, cap 256."""
    rows = _round_up(max(n, 1), 8)
    if rows <= 8:
        return 8
    half = _round_up((rows + 1) // 2, 8)
    return min(256, half)


def _w2v_gru_kernel(seq_ref, len_ref, embp_ref, whh_ref, bhh_ref,
                    out_ref, gi_scr, *, hidden, max_len, batch_tile,
                    hidden_pad, gate_pad, unroll):
    H, L, Nb = hidden, max_len, batch_tile
    HP, GP = hidden_pad, gate_pad
    Vp = embp_ref.shape[0]

    # ---- Pre-pass (single MXU call, off the serial path): input projection
    # for every (timestep, row).  One-hot rows are time-major (row = t*Nb + b);
    # b_ih is already folded into the fused table.
    seq_col = seq_ref[...]                                     # [L*Nb, 1] int32
    onehot = (lax.broadcasted_iota(jnp.int32, (L * Nb, Vp), 1)
              == seq_col).astype(jnp.float32)                  # [L*Nb, Vp]
    gi_scr[...] = jnp.dot(onehot, embp_ref[...],
                          preferred_element_type=jnp.float32)  # [L*Nb, GP]

    length = len_ref[...]                                      # [Nb, 1] int32
    whh = whh_ref[...]                                         # [HP, GP]
    bhh = jnp.broadcast_to(bhh_ref[...], (Nb, GP))             # hoisted

    # Packed gate columns: r @ [0,H), z @ [H,2H), n @ [2H,3H); h at cols [0,H).
    shift_r_to_n = 2 * H            # move r onto the n columns
    shift_z_to_h = GP - H           # move z onto cols [0, H)
    shift_n_to_h = GP - 2 * H       # move n onto cols [0, H)

    def step(t, h):
        row = pl.multiple_of(t * Nb, Nb)
        gi = gi_scr[pl.ds(row, Nb), :]                                 # [Nb, GP]
        gh = jnp.dot(h, whh, preferred_element_type=jnp.float32) + bhh
        s = jax.nn.sigmoid(gi + gh)                 # r, z live at their columns
        r_at_n = pltpu.roll(s, shift=shift_r_to_n, axis=1)
        n_full = jnp.tanh(gi + r_at_n * gh)         # valid at the n columns
        z = pltpu.roll(s, shift=shift_z_to_h, axis=1)[:, :HP]
        n = pltpu.roll(n_full, shift=shift_n_to_h, axis=1)[:, :HP]
        h_new = (1.0 - z) * n + z * h
        return jnp.where(t < length, h_new, h)      # mask past first pad

    h = lax.fori_loop(0, L, step, jnp.zeros((Nb, HP), jnp.float32),
                      unroll=unroll)
    out_ref[...] = h.astype(out_ref.dtype)          # lane-dense [Nb, HP] slab


def word2vec_embedding_forward(seq, emb_w, w_ih, w_hh, b_ih, b_hh, *, pad_idx):
    """seq: [N, L] int32.  Returns node_embedding [N, H] float32."""
    N, L = seq.shape
    V, _D = emb_w.shape
    H = w_hh.shape[1]
    assert w_ih.shape[0] == 3 * H and w_hh.shape == (3 * H, H)

    f32 = jnp.float32
    HP = _round_up(H, 128)                 # lane width of the hidden state
    GP = _round_up(3 * H, 128)             # lane width of the packed gate slab
    Vp = _round_up(V, 128)                 # one-hot contraction width
    Nb = _choose_batch_tile(N)
    N_pad = _round_up(N, Nb)
    n_tiles = N_pad // Nb
    unroll = max(1, min(8, L))

    # Fuse embedding table through the GRU input projection (+ b_ih) once.
    emb_proj = emb_w.astype(f32) @ w_ih.astype(f32).T + b_ih.astype(f32)[None, :]
    embp = jnp.zeros((Vp, GP), f32).at[:V, :3 * H].set(emb_proj)
    whhp = jnp.zeros((HP, GP), f32).at[:H, :3 * H].set(w_hh.astype(f32).T)
    bhhp = jnp.zeros((1, GP), f32).at[:, :3 * H].set(b_hh.astype(f32)[None, :])

    # Batch padding (all-pad rows -> length 0 -> h stays 0, sliced off).
    seq_p = jnp.full((N_pad, L), pad_idx, jnp.int32).at[:N, :].set(
        seq.astype(jnp.int32))

    # Time-major token column per tile (layout plumbing so the fused one-hot is
    # a single broadcast compare; avoids an in-kernel transpose/relayout).
    seq_tm = (seq_p.reshape(n_tiles, Nb, L).transpose(0, 2, 1)
              .reshape(n_tiles * L * Nb, 1))

    # Valid length per row = index of first pad (or L) — metadata, same as the
    # torch module's no_grad block.  Zero-length rows return h = 0.
    is_pad = seq_p == pad_idx
    first_pad = jnp.argmax(is_pad, axis=1).astype(jnp.int32)
    length = jnp.where(jnp.any(is_pad, axis=1), first_pad, L)
    length = length.astype(jnp.int32)[:, None]                 # [N_pad, 1]

    kernel = functools.partial(
        _w2v_gru_kernel, hidden=H, max_len=L, batch_tile=Nb,
        hidden_pad=HP, gate_pad=GP, unroll=unroll)

    # VMEM budget: weights (x2 if double-buffered) + pipelined I/O + gi scratch.
    est = 4 * (2 * Vp * GP + 2 * HP * GP + 2 * GP
               + 2 * L * Nb * 128 + 2 * Nb * 128 + 2 * Nb * HP
               + L * Nb * GP)
    vmem_limit = int(min(max(2 * est, 32 * 1024 * 1024), 64 * 1024 * 1024))

    def build(single_buffer_weights):
        def const_spec(shape):
            # Constant-index weights: single buffer (halves their footprint).
            if single_buffer_weights:
                return pl.BlockSpec(shape, lambda i: (0, 0),
                                    pipeline_mode=pl.Buffered(1))
            return pl.BlockSpec(shape, lambda i: (0, 0))

        grid_spec = pltpu.PrefetchScalarGridSpec(
            num_scalar_prefetch=0,
            grid=(n_tiles,),
            in_specs=[
                pl.BlockSpec((L * Nb, 1), lambda i: (i, 0)),   # token column
                pl.BlockSpec((Nb, 1), lambda i: (i, 0)),       # valid lengths
                const_spec((Vp, GP)),                          # fused emb proj
                const_spec((HP, GP)),                          # W_hh^T (packed)
                const_spec((1, GP)),                           # b_hh
            ],
            out_specs=pl.BlockSpec((Nb, HP), lambda i: (i, 0)),
            scratch_shapes=[pltpu.VMEM((L * Nb, GP), jnp.float32)],
        )
        return pl.pallas_call(
            kernel,
            out_shape=jax.ShapeDtypeStruct((N_pad, HP), jnp.float32),
            grid_spec=grid_spec,
            compiler_params=pltpu.CompilerParams(
                dimension_semantics=("parallel",),
                vmem_limit_bytes=vmem_limit),
        )

    args = (seq_tm, length, embp, whhp, bhhp)
    try:
        out = build(True)(*args)
    except Exception:
        # pipeline_mode=pl.Buffered(1) on top-level BlockSpecs may not be
        # supported by every JAX version; fall back to default buffering.
        out = build(False)(*args)

    return out[:N, :H]


def _reference_forward(seq, emb_w, w_ih, w_hh, b_ih, b_hh, *, pad_idx):
    """Pure-JAX reference (same math as PyTorch GRU + pack_padded masking)."""
    N, L = seq.shape
    H = w_hh.shape[1]
    x_all = emb_w[seq]                                  # [N, L, D]
    h = jnp.zeros((N, H), jnp.float32)
    valid = jnp.ones((N, 1), jnp.float32)
    for t in range(L):
        x_t = x_all[:, t, :]
        gi = x_t @ w_ih.T + b_ih
        gh = h @ w_hh.T + b_hh
        r = jax.nn.sigmoid(gi[:, :H] + gh[:, :H])
        z = jax.nn.sigmoid(gi[:, H:2 * H] + gh[:, H:2 * H])
        n = jnp.tanh(gi[:, 2 * H:] + r * gh[:, 2 * H:])
        h_new = (1.0 - z) * n + z * h
        valid = valid * (seq[:, t:t + 1] != pad_idx).astype(jnp.float32)
        h = valid * h_new + (1.0 - valid) * h
    return h


if __name__ == "__main__":
    # Small deterministic config.
    V, D, H = 64, 32, 32          # vocab, w2v vector_size (= RNN input), hidden
    N, L = 4, 8                   # n nodes, max seq len
    PAD = 0

    key = jax.random.PRNGKey(0)
    k_emb, k_wih, k_whh, k_bih, k_bhh, k_tok = jax.random.split(key, 6)

    # nn.Embedding weight, xavier_uniform_ init.
    bound_e = (6.0 / (V + D)) ** 0.5
    emb_w = jax.random.uniform(k_emb, (V, D), jnp.float32, -bound_e, bound_e)

    # GRU params, PyTorch default init U(-1/sqrt(H), 1/sqrt(H)), gate order (r, z, n).
    k_rnn = 1.0 / (H ** 0.5)
    w_ih = jax.random.uniform(k_wih, (3 * H, D), jnp.float32, -k_rnn, k_rnn)
    w_hh = jax.random.uniform(k_whh, (3 * H, H), jnp.float32, -k_rnn, k_rnn)
    b_ih = jax.random.uniform(k_bih, (3 * H,), jnp.float32, -k_rnn, k_rnn)
    b_hh = jax.random.uniform(k_bhh, (3 * H,), jnp.float32, -k_rnn, k_rnn)

    # Build seq: random non-pad tokens, then pad tail per-node (lengths >= 1).
    lengths = jnp.array([8, 5, 3, 1], dtype=jnp.int32)
    tokens = jax.random.randint(k_tok, (N, L), 1, V, dtype=jnp.int32)
    pos = jnp.arange(L, dtype=jnp.int32)[None, :]
    seq = jnp.where(pos < lengths[:, None], tokens, PAD).astype(jnp.int32)

    out = word2vec_embedding_forward(seq, emb_w, w_ih, w_hh, b_ih, b_hh, pad_idx=PAD)
    out = jax.block_until_ready(out)

    ref = _reference_forward(seq, emb_w, w_ih, w_hh, b_ih, b_hh, pad_idx=PAD)
    assert out.shape == (N, H) and out.dtype == jnp.float32
    assert jnp.allclose(out, ref, rtol=1e-4, atol=1e-4), "mismatch vs JAX reference"

    print("KERNEL_OK")
</pallas_src>

<mosaic_0001>
module attributes {stable_mosaic.version = 11 : i64} {
  func.func @_w2v_gru_kernel(%arg0: i32, %arg1: memref<64x1xi32, #tpu.memory_space<vmem>>, %arg2: memref<8x1xi32, #tpu.memory_space<vmem>>, %arg3: memref<128x128xf32, #tpu.memory_space<vmem>>, %arg4: memref<128x128xf32, #tpu.memory_space<vmem>>, %arg5: memref<1x128xf32, #tpu.memory_space<vmem>>, %arg6: memref<8x128xf32, #tpu.memory_space<vmem>>, %arg7: memref<64x128xf32, #tpu.memory_space<vmem>>) attributes {dimension_semantics = [#tpu.dimension_semantics<parallel>], iteration_bounds = array<i64: 1>, scalar_prefetch = 0 : i64, scratch_operands = 1 : i64, tpu.core_type = #tpu.core_type<tc>, window_params = [{transform_indices = @transform_0, window_bounds = array<i64: 64, 1>}, {transform_indices = @transform_1, window_bounds = array<i64: 8, 1>}, {pipeline_mode = #tpu.pipeline_mode<synchronous>, transform_indices = @transform_2, window_bounds = array<i64: 128, 128>}, {pipeline_mode = #tpu.pipeline_mode<synchronous>, transform_indices = @transform_3, window_bounds = array<i64: 128, 128>}, {pipeline_mode = #tpu.pipeline_mode<synchronous>, transform_indices = @transform_4, window_bounds = array<i64: 1, 128>}, {transform_indices = @transform_5, window_bounds = array<i64: 8, 128>}]} {
    %c0 = arith.constant 0 : index
    %c0_0 = arith.constant 0 : index
    %0 = vector.load %arg1[%c0, %c0_0] : memref<64x1xi32, #tpu.memory_space<vmem>>, vector<64x1xi32>
    %1 = tpu.iota {dimensions = array<i32: 1>} : vector<64x128xi32>
    %2 = vector.broadcast %0 : vector<64x1xi32> to vector<64x128xi32>
    %3 = arith.cmpi eq, %1, %2 : vector<64x128xi32>
    %4 = arith.extui %3 : vector<64x128xi1> to vector<64x128xi32>
    %5 = arith.sitofp %4 : vector<64x128xi32> to vector<64x128xf32>
    %c0_1 = arith.constant 0 : index
    %c0_2 = arith.constant 0 : index
    %6 = vector.load %arg3[%c0_1, %c0_2] : memref<128x128xf32, #tpu.memory_space<vmem>>, vector<128x128xf32>
    %cst = arith.constant dense<0.000000e+00> : vector<64x128xf32>
    %7 = tpu.matmul %5, %6, %cst {dimension_numbers = #tpu.dot_dimension_numbers<[1], [0], [0], [1], [0, 0, 1, 1], [], []>} : vector<64x128xf32>, vector<128x128xf32>, vector<64x128xf32> -> vector<64x128xf32>
    %c0_3 = arith.constant 0 : index
    %c0_4 = arith.constant 0 : index
    %8 = vector.load %arg7[%c0_3, %c0_4] : memref<64x128xf32, #tpu.memory_space<vmem>>, vector<64x128xf32>
    tpu.vector_store %arg7[%c0_3, %c0_4], %7 {strides = array<i32>} : memref<64x128xf32, #tpu.memory_space<vmem>>, vector<64x128xf32>,
    %c0_5 = arith.constant 0 : index
    %c0_6 = arith.constant 0 : index
    %9 = vector.load %arg2[%c0_5, %c0_6] : memref<8x1xi32, #tpu.memory_space<vmem>>, vector<8x1xi32>
    %c0_7 = arith.constant 0 : index
    %c0_8 = arith.constant 0 : index
    %10 = vector.load %arg4[%c0_7, %c0_8] : memref<128x128xf32, #tpu.memory_space<vmem>>, vector<128x128xf32>
    %c0_9 = arith.constant 0 : index
    %c0_10 = arith.constant 0 : index
    %11 = vector.load %arg5[%c0_9, %c0_10] : memref<1x128xf32, #tpu.memory_space<vmem>>, vector<1x128xf32>
    %12 = vector.shape_cast %11 : vector<1x128xf32> to vector<1x128xf32>
    %13 = vector.broadcast %12 : vector<1x128xf32> to vector<8x128xf32>
    %cst_11 = arith.constant 0.000000e+00 : f32
    %14 = vector.broadcast %cst_11 : f32 to vector<8x128xf32>
    %c0_i32 = arith.constant 0 : i32
    %c8_i32 = arith.constant 8 : i32
    %15 = arith.muli %c0_i32, %c8_i32 : i32
    %16 = tpu.assume_multiple %15, 8 : i32
    %17 = arith.index_cast %16 : i32 to index
    %c0_12 = arith.constant 0 : index
    %18 = vector.load %arg7[%17, %c0_12] : memref<64x128xf32, #tpu.memory_space<vmem>>, vector<8x128xf32>
    %cst_13 = arith.constant dense<0.000000e+00> : vector<8x128xf32>
    %19 = tpu.matmul %14, %10, %cst_13 {dimension_numbers = #tpu.dot_dimension_numbers<[1], [0], [0], [1], [0, 0, 1, 1], [], []>} : vector<8x128xf32>, vector<128x128xf32>, vector<8x128xf32> -> vector<8x128xf32>
    %20 = arith.addf %19, %13 : vector<8x128xf32>
    %21 = arith.addf %18, %20 : vector<8x128xf32>
    %22 = arith.negf %21 : vector<8x128xf32>
    %23 = math.exp %22 : vector<8x128xf32>
    %cst_14 = arith.constant 1.000000e+00 : f32
    %24 = vector.broadcast %cst_14 : f32 to vector<8x128xf32>
    %25 = arith.addf %24, %23 : vector<8x128xf32>
    %26 = arith.divf %24, %25 : vector<8x128xf32>
    %c64_i32 = arith.constant 64 : i32
    %27 = tpu.dynamic_rotate %26 by %c64_i32 dim 1 : vector<8x128xf32>, i32 -> vector<8x128xf32>
    %28 = arith.mulf %27, %20 : vector<8x128xf32>
    %29 = arith.addf %18, %28 : vector<8x128xf32>
    %30 = math.tanh %29 : vector<8x128xf32>
    %c96_i32 = arith.constant 96 : i32
    %31 = tpu.dynamic_rotate %26 by %c96_i32 dim 1 : vector<8x128xf32>, i32 -> vector<8x128xf32>
    %c64_i32_15 = arith.constant 64 : i32
    %32 = tpu.dynamic_rotate %30 by %c64_i32_15 dim 1 : vector<8x128xf32>, i32 -> vector<8x128xf32>
    %cst_16 = arith.constant 1.000000e+00 : f32
    %33 = vector.broadcast %cst_16 : f32 to vector<8x128xf32>
    %34 = arith.subf %33, %31 : vector<8x128xf32>
    %35 = arith.mulf %34, %32 : vector<8x128xf32>
    %36 = arith.mulf %31, %14 : vector<8x128xf32>
    %37 = arith.addf %35, %36 : vector<8x128xf32>
    %38 = vector.broadcast %c0_i32 : i32 to vector<8x1xi32>
    %39 = arith.cmpi slt, %38, %9 : vector<8x1xi32>
    %40 = vector.shape_cast %39 : vector<8x1xi1> to vector<8x1xi1>
    %41 = vector.broadcast %40 : vector<8x1xi1> to vector<8x128xi1>
    %42 = arith.select %41, %37, %14 : vector<8x128xi1>, vector<8x128xf32>
    %c1_i32 = arith.constant 1 : i32
    %c8_i32_17 = arith.constant 8 : i32
    %43 = arith.muli %c1_i32, %c8_i32_17 : i32
    %44 = tpu.assume_multiple %43, 8 : i32
    %45 = arith.index_cast %44 : i32 to index
    %c0_18 = arith.constant 0 : index
    %46 = vector.load %arg7[%45, %c0_18] : memref<64x128xf32, #tpu.memory_space<vmem>>, vector<8x128xf32>
    %cst_19 = arith.constant dense<0.000000e+00> : vector<8x128xf32>
    %47 = tpu.matmul %42, %10, %cst_19 {dimension_numbers = #tpu.dot_dimension_numbers<[1], [0], [0], [1], [0, 0, 1, 1], [], []>} : vector<8x128xf32>, vector<128x128xf32>, vector<8x128xf32> -> vector<8x128xf32>
    %48 = arith.addf %47, %13 : vector<8x128xf32>
    %49 = arith.addf %46, %48 : vector<8x128xf32>
    %50 = arith.negf %49 : vector<8x128xf32>
    %51 = math.exp %50 : vector<8x128xf32>
    %cst_20 = arith.constant 1.000000e+00 : f32
    %52 = vector.broadcast %cst_20 : f32 to vector<8x128xf32>
    %53 = arith.addf %52, %51 : vector<8x128xf32>
    %54 = arith.divf %52, %53 : vector<8x128xf32>
    %c64_i32_21 = arith.constant 64 : i32
    %55 = tpu.dynamic_rotate %54 by %c64_i32_21 dim 1 : vector<8x128xf32>, i32 -> vector<8x128xf32>
    %56 = arith.mulf %55, %48 : vector<8x128xf32>
    %57 = arith.addf %46, %56 : vector<8x128xf32>
    %58 = math.tanh %57 : vector<8x128xf32>
    %c96_i32_22 = arith.constant 96 : i32
    %59 = tpu.dynamic_rotate %54 by %c96_i32_22 dim 1 : vector<8x128xf32>, i32 -> vector<8x128xf32>
    %c64_i32_23 = arith.constant 64 : i32
    %60 = tpu.dynamic_rotate %58 by %c64_i32_23 dim 1 : vector<8x128xf32>, i32 -> vector<8x128xf32>
    %cst_24 = arith.constant 1.000000e+00 : f32
    %61 = vector.broadcast %cst_24 : f32 to vector<8x128xf32>
    %62 = arith.subf %61, %59 : vector<8x128xf32>
    %63 = arith.mulf %62, %60 : vector<8x128xf32>
    %64 = arith.mulf %59, %42 : vector<8x128xf32>
    %65 = arith.addf %63, %64 : vector<8x128xf32>
    %66 = vector.broadcast %c1_i32 : i32 to vector<8x1xi32>
    %67 = arith.cmpi slt, %66, %9 : vector<8x1xi32>
    %68 = vector.shape_cast %67 : vector<8x1xi1> to vector<8x1xi1>
    %69 = vector.broadcast %68 : vector<8x1xi1> to vector<8x128xi1>
    %70 = arith.select %69, %65, %42 : vector<8x128xi1>, vector<8x128xf32>
    %c2_i32 = arith.constant 2 : i32
    %c8_i32_25 = arith.constant 8 : i32
    %71 = arith.muli %c2_i32, %c8_i32_25 : i32
    %72 = tpu.assume_multiple %71, 8 : i32
    %73 = arith.index_cast %72 : i32 to index
    %c0_26 = arith.constant 0 : index
    %74 = vector.load %arg7[%73, %c0_26] : memref<64x128xf32, #tpu.memory_space<vmem>>, vector<8x128xf32>
    %cst_27 = arith.constant dense<0.000000e+00> : vector<8x128xf32>
    %75 = tpu.matmul %70, %10, %cst_27 {dimension_numbers = #tpu.dot_dimension_numbers<[1], [0], [0], [1], [0, 0, 1, 1], [], []>} : vector<8x128xf32>, vector<128x128xf32>, vector<8x128xf32> -> vector<8x128xf32>
    %76 = arith.addf %75, %13 : vector<8x128xf32>
    %77 = arith.addf %74, %76 : vector<8x128xf32>
    %78 = arith.negf %77 : vector<8x128xf32>
    %79 = math.exp %78 : vector<8x128xf32>
    %cst_28 = arith.constant 1.000000e+00 : f32
    %80 = vector.broadcast %cst_28 : f32 to vector<8x128xf32>
    %81 = arith.addf %80, %79 : vector<8x128xf32>
    %82 = arith.divf %80, %81 : vector<8x128xf32>
    %c64_i32_29 = arith.constant 64 : i32
    %83 = tpu.dynamic_rotate %82 by %c64_i32_29 dim 1 : vector<8x128xf32>, i32 -> vector<8x128xf32>
    %84 = arith.mulf %83, %76 : vector<8x128xf32>
    %85 = arith.addf %74, %84 : vector<8x128xf32>
    %86 = math.tanh %85 : vector<8x128xf32>
    %c96_i32_30 = arith.constant 96 : i32
    %87 = tpu.dynamic_rotate %82 by %c96_i32_30 dim 1 : vector<8x128xf32>, i32 -> vector<8x128xf32>
    %c64_i32_31 = arith.constant 64 : i32
    %88 = tpu.dynamic_rotate %86 by %c64_i32_31 dim 1 : vector<8x128xf32>, i32 -> vector<8x128xf32>
    %cst_32 = arith.constant 1.000000e+00 : f32
    %89 = vector.broadcast %cst_32 : f32 to vector<8x128xf32>
    %90 = arith.subf %89, %87 : vector<8x128xf32>
    %91 = arith.mulf %90, %88 : vector<8x128xf32>
    %92 = arith.mulf %87, %70 : vector<8x128xf32>
    %93 = arith.addf %91, %92 : vector<8x128xf32>
    %94 = vector.broadcast %c2_i32 : i32 to vector<8x1xi32>
    %95 = arith.cmpi slt, %94, %9 : vector<8x1xi32>
    %96 = vector.shape_cast %95 : vector<8x1xi1> to vector<8x1xi1>
    %97 = vector.broadcast %96 : vector<8x1xi1> to vector<8x128xi1>
    %98 = arith.select %97, %93, %70 : vector<8x128xi1>, vector<8x128xf32>
    %c3_i32 = arith.constant 3 : i32
    %c8_i32_33 = arith.constant 8 : i32
    %99 = arith.muli %c3_i32, %c8_i32_33 : i32
    %100 = tpu.assume_multiple %99, 8 : i32
    %101 = arith.index_cast %100 : i32 to index
    %c0_34 = arith.constant 0 : index
    %102 = vector.load %arg7[%101, %c0_34] : memref<64x128xf32, #tpu.memory_space<vmem>>, vector<8x128xf32>
    %cst_35 = arith.constant dense<0.000000e+00> : vector<8x128xf32>
    %103 = tpu.matmul %98, %10, %cst_35 {dimension_numbers = #tpu.dot_dimension_numbers<[1], [0], [0], [1], [0, 0, 1, 1], [], []>} : vector<8x128xf32>, vector<128x128xf32>, vector<8x128xf32> -> vector<8x128xf32>
    %104 = arith.addf %103, %13 : vector<8x128xf32>
    %105 = arith.addf %102, %104 : vector<8x128xf32>
    %106 = arith.negf %105 : vector<8x128xf32>
    %107 = math.exp %106 : vector<8x128xf32>
    %cst_36 = arith.constant 1.000000e+00 : f32
    %108 = vector.broadcast %cst_36 : f32 to vector<8x128xf32>
    %109 = arith.addf %108, %107 : vector<8x128xf32>
    %110 = arith.divf %108, %109 : vector<8x128xf32>
    %c64_i32_37 = arith.constant 64 : i32
    %111 = tpu.dynamic_rotate %110 by %c64_i32_37 dim 1 : vector<8x128xf32>, i32 -> vector<8x128xf32>
    %112 = arith.mulf %111, %104 : vector<8x128xf32>
    %113 = arith.addf %102, %112 : vector<8x128xf32>
    %114 = math.tanh %113 : vector<8x128xf32>
    %c96_i32_38 = arith.constant 96 : i32
    %115 = tpu.dynamic_rotate %110 by %c96_i32_38 dim 1 : vector<8x128xf32>, i32 -> vector<8x128xf32>
    %c64_i32_39 = arith.constant 64 : i32
    %116 = tpu.dynamic_rotate %114 by %c64_i32_39 dim 1 : vector<8x128xf32>, i32 -> vector<8x128xf32>
    %cst_40 = arith.constant 1.000000e+00 : f32
    %117 = vector.broadcast %cst_40 : f32 to vector<8x128xf32>
    %118 = arith.subf %117, %115 : vector<8x128xf32>
    %119 = arith.mulf %118, %116 : vector<8x128xf32>
    %120 = arith.mulf %115, %98 : vector<8x128xf32>
    %121 = arith.addf %119, %120 : vector<8x128xf32>
    %122 = vector.broadcast %c3_i32 : i32 to vector<8x1xi32>
    %123 = arith.cmpi slt, %122, %9 : vector<8x1xi32>
    %124 = vector.shape_cast %123 : vector<8x1xi1> to vector<8x1xi1>
    %125 = vector.broadcast %124 : vector<8x1xi1> to vector<8x128xi1>
    %126 = arith.select %125, %121, %98 : vector<8x128xi1>, vector<8x128xf32>
    %c4_i32 = arith.constant 4 : i32
    %c8_i32_41 = arith.constant 8 : i32
    %127 = arith.muli %c4_i32, %c8_i32_41 : i32
    %128 = tpu.assume_multiple %127, 8 : i32
    %129 = arith.index_cast %128 : i32 to index
    %c0_42 = arith.constant 0 : index
    %130 = vector.load %arg7[%129, %c0_42] : memref<64x128xf32, #tpu.memory_space<vmem>>, vector<8x128xf32>
    %cst_43 = arith.constant dense<0.000000e+00> : vector<8x128xf32>
    %131 = tpu.matmul %126, %10, %cst_43 {dimension_numbers = #tpu.dot_dimension_numbers<[1], [0], [0], [1], [0, 0, 1, 1], [], []>} : vector<8x128xf32>, vector<128x128xf32>, vector<8x128xf32> -> vector<8x128xf32>
    %132 = arith.addf %131, %13 : vector<8x128xf32>
    %133 = arith.addf %130, %132 : vector<8x128xf32>
    %134 = arith.negf %133 : vector<8x128xf32>
    %135 = math.exp %134 : vector<8x128xf32>
    %cst_44 = arith.constant 1.000000e+00 : f32
    %136 = vector.broadcast %cst_44 : f32 to vector<8x128xf32>
    %137 = arith.addf %136, %135 : vector<8x128xf32>
    %138 = arith.divf %136, %137 : vector<8x128xf32>
    %c64_i32_45 = arith.constant 64 : i32
    %139 = tpu.dynamic_rotate %138 by %c64_i32_45 dim 1 : vector<8x128xf32>, i32 -> vector<8x128xf32>
    %140 = arith.mulf %139, %132 : vector<8x128xf32>
    %141 = arith.addf %130, %140 : vector<8x128xf32>
    %142 = math.tanh %141 : vector<8x128xf32>
    %c96_i32_46 = arith.constant 96 : i32
    %143 = tpu.dynamic_rotate %138 by %c96_i32_46 dim 1 : vector<8x128xf32>, i32 -> vector<8x128xf32>
    %c64_i32_47 = arith.constant 64 : i32
    %144 = tpu.dynamic_rotate %142 by %c64_i32_47 dim 1 : vector<8x128xf32>, i32 -> vector<8x128xf32>
    %cst_48 = arith.constant 1.000000e+00 : f32
    %145 = vector.broadcast %cst_48 : f32 to vector<8x128xf32>
    %146 = arith.subf %145, %143 : vector<8x128xf32>
    %147 = arith.mulf %146, %144 : vector<8x128xf32>
    %148 = arith.mulf %143, %126 : vector<8x128xf32>
    %149 = arith.addf %147, %148 : vector<8x128xf32>
    %150 = vector.broadcast %c4_i32 : i32 to vector<8x1xi32>
    %151 = arith.cmpi slt, %150, %9 : vector<8x1xi32>
    %152 = vector.shape_cast %151 : vector<8x1xi1> to vector<8x1xi1>
    %153 = vector.broadcast %152 : vector<8x1xi1> to vector<8x128xi1>
    %154 = arith.select %153, %149, %126 : vector<8x128xi1>, vector<8x128xf32>
    %c5_i32 = arith.constant 5 : i32
    %c8_i32_49 = arith.constant 8 : i32
    %155 = arith.muli %c5_i32, %c8_i32_49 : i32
    %156 = tpu.assume_multiple %155, 8 : i32
    %157 = arith.index_cast %156 : i32 to index
    %c0_50 = arith.constant 0 : index
    %158 = vector.load %arg7[%157, %c0_50] : memref<64x128xf32, #tpu.memory_space<vmem>>, vector<8x128xf32>
    %cst_51 = arith.constant dense<0.000000e+00> : vector<8x128xf32>
    %159 = tpu.matmul %154, %10, %cst_51 {dimension_numbers = #tpu.dot_dimension_numbers<[1], [0], [0], [1], [0, 0, 1, 1], [], []>} : vector<8x128xf32>, vector<128x128xf32>, vector<8x128xf32> -> vector<8x128xf32>
    %160 = arith.addf %159, %13 : vector<8x128xf32>
    %161 = arith.addf %158, %160 : vector<8x128xf32>
    %162 = arith.negf %161 : vector<8x128xf32>
    %163 = math.exp %162 : vector<8x128xf32>
    %cst_52 = arith.constant 1.000000e+00 : f32
    %164 = vector.broadcast %cst_52 : f32 to vector<8x128xf32>
    %165 = arith.addf %164, %163 : vector<8x128xf32>
    %166 = arith.divf %164, %165 : vector<8x128xf32>
    %c64_i32_53 = arith.constant 64 : i32
    %167 = tpu.dynamic_rotate %166 by %c64_i32_53 dim 1 : vector<8x128xf32>, i32 -> vector<8x128xf32>
    %168 = arith.mulf %167, %160 : vector<8x128xf32>
    %169 = arith.addf %158, %168 : vector<8x128xf32>
    %170 = math.tanh %169 : vector<8x128xf32>
    %c96_i32_54 = arith.constant 96 : i32
    %171 = tpu.dynamic_rotate %166 by %c96_i32_54 dim 1 : vector<8x128xf32>, i32 -> vector<8x128xf32>
    %c64_i32_55 = arith.constant 64 : i32
    %172 = tpu.dynamic_rotate %170 by %c64_i32_55 dim 1 : vector<8x128xf32>, i32 -> vector<8x128xf32>
    %cst_56 = arith.constant 1.000000e+00 : f32
    %173 = vector.broadcast %cst_56 : f32 to vector<8x128xf32>
    %174 = arith.subf %173, %171 : vector<8x128xf32>
    %175 = arith.mulf %174, %172 : vector<8x128xf32>
    %176 = arith.mulf %171, %154 : vector<8x128xf32>
    %177 = arith.addf %175, %176 : vector<8x128xf32>
    %178 = vector.broadcast %c5_i32 : i32 to vector<8x1xi32>
    %179 = arith.cmpi slt, %178, %9 : vector<8x1xi32>
    %180 = vector.shape_cast %179 : vector<8x1xi1> to vector<8x1xi1>
    %181 = vector.broadcast %180 : vector<8x1xi1> to vector<8x128xi1>
    %182 = arith.select %181, %177, %154 : vector<8x128xi1>, vector<8x128xf32>
    %c6_i32 = arith.constant 6 : i32
    %c8_i32_57 = arith.constant 8 : i32
    %183 = arith.muli %c6_i32, %c8_i32_57 : i32
    %184 = tpu.assume_multiple %183, 8 : i32
    %185 = arith.index_cast %184 : i32 to index
    %c0_58 = arith.constant 0 : index
    %186 = vector.load %arg7[%185, %c0_58] : memref<64x128xf32, #tpu.memory_space<vmem>>, vector<8x128xf32>
    %cst_59 = arith.constant dense<0.000000e+00> : vector<8x128xf32>
    %187 = tpu.matmul %182, %10, %cst_59 {dimension_numbers = #tpu.dot_dimension_numbers<[1], [0], [0], [1], [0, 0, 1, 1], [], []>} : vector<8x128xf32>, vector<128x128xf32>, vector<8x128xf32> -> vector<8x128xf32>
    %188 = arith.addf %187, %13 : vector<8x128xf32>
    %189 = arith.addf %186, %188 : vector<8x128xf32>
    %190 = arith.negf %189 : vector<8x128xf32>
    %191 = math.exp %190 : vector<8x128xf32>
    %cst_60 = arith.constant 1.000000e+00 : f32
    %192 = vector.broadcast %cst_60 : f32 to vector<8x128xf32>
    %193 = arith.addf %192, %191 : vector<8x128xf32>
    %194 = arith.divf %192, %193 : vector<8x128xf32>
    %c64_i32_61 = arith.constant 64 : i32
    %195 = tpu.dynamic_rotate %194 by %c64_i32_61 dim 1 : vector<8x128xf32>, i32 -> vector<8x128xf32>
    %196 = arith.mulf %195, %188 : vector<8x128xf32>
    %197 = arith.addf %186, %196 : vector<8x128xf32>
    %198 = math.tanh %197 : vector<8x128xf32>
    %c96_i32_62 = arith.constant 96 : i32
    %199 = tpu.dynamic_rotate %194 by %c96_i32_62 dim 1 : vector<8x128xf32>, i32 -> vector<8x128xf32>
    %c64_i32_63 = arith.constant 64 : i32
    %200 = tpu.dynamic_rotate %198 by %c64_i32_63 dim 1 : vector<8x128xf32>, i32 -> vector<8x128xf32>
    %cst_64 = arith.constant 1.000000e+00 : f32
    %201 = vector.broadcast %cst_64 : f32 to vector<8x128xf32>
    %202 = arith.subf %201, %199 : vector<8x128xf32>
    %203 = arith.mulf %202, %200 : vector<8x128xf32>
    %204 = arith.mulf %199, %182 : vector<8x128xf32>
    %205 = arith.addf %203, %204 : vector<8x128xf32>
    %206 = vector.broadcast %c6_i32 : i32 to vector<8x1xi32>
    %207 = arith.cmpi slt, %206, %9 : vector<8x1xi32>
    %208 = vector.shape_cast %207 : vector<8x1xi1> to vector<8x1xi1>
    %209 = vector.broadcast %208 : vector<8x1xi1> to vector<8x128xi1>
    %210 = arith.select %209, %205, %182 : vector<8x128xi1>, vector<8x128xf32>
    %c7_i32 = arith.constant 7 : i32
    %c8_i32_65 = arith.constant 8 : i32
    %211 = arith.muli %c7_i32, %c8_i32_65 : i32
    %212 = tpu.assume_multiple %211, 8 : i32
    %213 = arith.index_cast %212 : i32 to index
    %c0_66 = arith.constant 0 : index
    %214 = vector.load %arg7[%213, %c0_66] : memref<64x128xf32, #tpu.memory_space<vmem>>, vector<8x128xf32>
    %cst_67 = arith.constant dense<0.000000e+00> : vector<8x128xf32>
    %215 = tpu.matmul %210, %10, %cst_67 {dimension_numbers = #tpu.dot_dimension_numbers<[1], [0], [0], [1], [0, 0, 1, 1], [], []>} : vector<8x128xf32>, vector<128x128xf32>, vector<8x128xf32> -> vector<8x128xf32>
    %216 = arith.addf %215, %13 : vector<8x128xf32>
    %217 = arith.addf %214, %216 : vector<8x128xf32>
    %218 = arith.negf %217 : vector<8x128xf32>
    %219 = math.exp %218 : vector<8x128xf32>
    %cst_68 = arith.constant 1.000000e+00 : f32
    %220 = vector.broadcast %cst_68 : f32 to vector<8x128xf32>
    %221 = arith.addf %220, %219 : vector<8x128xf32>
    %222 = arith.divf %220, %221 : vector<8x128xf32>
    %c64_i32_69 = arith.constant 64 : i32
    %223 = tpu.dynamic_rotate %222 by %c64_i32_69 dim 1 : vector<8x128xf32>, i32 -> vector<8x128xf32>
    %224 = arith.mulf %223, %216 : vector<8x128xf32>
    %225 = arith.addf %214, %224 : vector<8x128xf32>
    %226 = math.tanh %225 : vector<8x128xf32>
    %c96_i32_70 = arith.constant 96 : i32
    %227 = tpu.dynamic_rotate %222 by %c96_i32_70 dim 1 : vector<8x128xf32>, i32 -> vector<8x128xf32>
    %c64_i32_71 = arith.constant 64 : i32
    %228 = tpu.dynamic_rotate %226 by %c64_i32_71 dim 1 : vector<8x128xf32>, i32 -> vector<8x128xf32>
    %cst_72 = arith.constant 1.000000e+00 : f32
    %229 = vector.broadcast %cst_72 : f32 to vector<8x128xf32>
    %230 = arith.subf %229, %227 : vector<8x128xf32>
    %231 = arith.mulf %230, %228 : vector<8x128xf32>
    %232 = arith.mulf %227, %210 : vector<8x128xf32>
    %233 = arith.addf %231, %232 : vector<8x128xf32>
    %234 = vector.broadcast %c7_i32 : i32 to vector<8x1xi32>
    %235 = arith.cmpi slt, %234, %9 : vector<8x1xi32>
    %236 = vector.shape_cast %235 : vector<8x1xi1> to vector<8x1xi1>
    %237 = vector.broadcast %236 : vector<8x1xi1> to vector<8x128xi1>
    %238 = arith.select %237, %233, %210 : vector<8x128xi1>, vector<8x128xf32>
    %c8_i32_73 = arith.constant 8 : i32
    %c0_74 = arith.constant 0 : index
    %c0_75 = arith.constant 0 : index
    %239 = vector.load %arg6[%c0_74, %c0_75] : memref<8x128xf32, #tpu.memory_space<vmem>>, vector<8x128xf32>
    tpu.vector_store %arg6[%c0_74, %c0_75], %238 {strides = array<i32>} : memref<8x128xf32, #tpu.memory_space<vmem>>, vector<8x128xf32>,
    return
  }
  func.func @transform_0(%arg0: i32) -> (i32, i32) {
    %c0_i32 = arith.constant 0 : i32
    %c0_i32_0 = arith.constant 0 : i32
    return %arg0, %c0_i32 : i32, i32
  }
  func.func @transform_1(%arg0: i32) -> (i32, i32) {
    %c0_i32 = arith.constant 0 : i32
    %c0_i32_0 = arith.constant 0 : i32
    return %arg0, %c0_i32 : i32, i32
  }
  func.func @transform_2(%arg0: i32) -> (i32, i32) {
    %c0_i32 = arith.constant 0 : i32
    %c0_i32_0 = arith.constant 0 : i32
    %c0_i32_1 = arith.constant 0 : i32
    return %c0_i32, %c0_i32_0 : i32, i32
  }
  func.func @transform_3(%arg0: i32) -> (i32, i32) {
    %c0_i32 = arith.constant 0 : i32
    %c0_i32_0 = arith.constant 0 : i32
    %c0_i32_1 = arith.constant 0 : i32
    return %c0_i32, %c0_i32_0 : i32, i32
  }
  func.func @transform_4(%arg0: i32) -> (i32, i32) {
    %c0_i32 = arith.constant 0 : i32
    %c0_i32_0 = arith.constant 0 : i32
    %c0_i32_1 = arith.constant 0 : i32
    return %c0_i32, %c0_i32_0 : i32, i32
  }
  func.func @transform_5(%arg0: i32) -> (i32, i32) {
    %c0_i32 = arith.constant 0 : i32
    %c0_i32_0 = arith.constant 0 : i32
    return %arg0, %c0_i32 : i32, i32
  }
}

module attributes {stable_mosaic.version = 11 : i64} {
  func.func @_w2v_gru_kernel(%arg0: i32, %arg1: memref<64x1xi32, #tpu.memory_space<vmem>>, %arg2: memref<8x1xi32, #tpu.memory_space<vmem>>, %arg3: memref<128x128xf32, #tpu.memory_space<vmem>>, %arg4: memref<128x128xf32, #tpu.memory_space<vmem>>, %arg5: memref<1x128xf32, #tpu.memory_space<vmem>>, %arg6: memref<8x128xf32, #tpu.memory_space<vmem>>, %arg7: memref<64x128xf32, #tpu.memory_space<vmem>>) attributes {dimension_semantics = [#tpu.dimension_semantics<parallel>], iteration_bounds = array<i64: 1>, scalar_prefetch = 0 : i64, scratch_operands = 1 : i64, tpu.core_type = #tpu.core_type<tc>, window_params = [{transform_indices = @transform_0, window_bounds = array<i64: 64, 1>}, {transform_indices = @transform_1, window_bounds = array<i64: 8, 1>}, {pipeline_mode = #tpu.pipeline_mode<synchronous>, transform_indices = @transform_2, window_bounds = array<i64: 128, 128>}, {pipeline_mode = #tpu.pipeline_mode<synchronous>, transform_indices = @transform_3, window_bounds = array<i64: 128, 128>}, {pipeline_mode = #tpu.pipeline_mode<synchronous>, transform_indices = @transform_4, window_bounds = array<i64: 1, 128>}, {transform_indices = @transform_5, window_bounds = array<i64: 8, 128>}]} {
    %c0 = arith.constant 0 : index
    %c0_0 = arith.constant 0 : index
    %0 = vector.load %arg1[%c0, %c0_0] : memref<64x1xi32, #tpu.memory_space<vmem>>, vector<64x1xi32>
    %1 = tpu.iota {dimensions = array<i32: 1>} : vector<64x128xi32>
    %2 = vector.broadcast %0 : vector<64x1xi32> to vector<64x128xi32>
    %3 = arith.cmpi eq, %1, %2 : vector<64x128xi32>
    %4 = arith.extui %3 : vector<64x128xi1> to vector<64x128xi32>
    %5 = arith.sitofp %4 : vector<64x128xi32> to vector<64x128xf32>
    %c0_1 = arith.constant 0 : index
    %c0_2 = arith.constant 0 : index
    %6 = vector.load %arg3[%c0_1, %c0_2] : memref<128x128xf32, #tpu.memory_space<vmem>>, vector<128x128xf32>
    %cst = arith.constant dense<0.000000e+00> : vector<64x128xf32>
    %7 = tpu.matmul %5, %6, %cst {dimension_numbers = #tpu.dot_dimension_numbers<[1], [0], [0], [1], [0, 0, 1, 1], [], []>} : vector<64x128xf32>, vector<128x128xf32>, vector<64x128xf32> -> vector<64x128xf32>
    %c0_3 = arith.constant 0 : index
    %c0_4 = arith.constant 0 : index
    %8 = vector.load %arg7[%c0_3, %c0_4] : memref<64x128xf32, #tpu.memory_space<vmem>>, vector<64x128xf32>
    tpu.vector_store %arg7[%c0_3, %c0_4], %7 {strides = array<i32>} : memref<64x128xf32, #tpu.memory_space<vmem>>, vector<64x128xf32>,
    %c0_5 = arith.constant 0 : index
    %c0_6 = arith.constant 0 : index
    %9 = vector.load %arg2[%c0_5, %c0_6] : memref<8x1xi32, #tpu.memory_space<vmem>>, vector<8x1xi32>
    %c0_7 = arith.constant 0 : index
    %c0_8 = arith.constant 0 : index
    %10 = vector.load %arg4[%c0_7, %c0_8] : memref<128x128xf32, #tpu.memory_space<vmem>>, vector<128x128xf32>
    %c0_9 = arith.constant 0 : index
    %c0_10 = arith.constant 0 : index
    %11 = vector.load %arg5[%c0_9, %c0_10] : memref<1x128xf32, #tpu.memory_space<vmem>>, vector<1x128xf32>
    %12 = vector.shape_cast %11 : vector<1x128xf32> to vector<1x128xf32>
    %13 = vector.broadcast %12 : vector<1x128xf32> to vector<8x128xf32>
    %cst_11 = arith.constant 0.000000e+00 : f32
    %14 = vector.broadcast %cst_11 : f32 to vector<8x128xf32>
    %c0_i32 = arith.constant 0 : i32
    %c8_i32 = arith.constant 8 : i32
    %15 = arith.muli %c0_i32, %c8_i32 : i32
    %16 = tpu.assume_multiple %15, 8 : i32
    %17 = arith.index_cast %16 : i32 to index
    %c0_12 = arith.constant 0 : index
    %18 = vector.load %arg7[%17, %c0_12] : memref<64x128xf32, #tpu.memory_space<vmem>>, vector<8x128xf32>
    %cst_13 = arith.constant dense<0.000000e+00> : vector<8x128xf32>
    %19 = tpu.matmul %14, %10, %cst_13 {dimension_numbers = #tpu.dot_dimension_numbers<[1], [0], [0], [1], [0, 0, 1, 1], [], []>} : vector<8x128xf32>, vector<128x128xf32>, vector<8x128xf32> -> vector<8x128xf32>
    %20 = arith.addf %19, %13 : vector<8x128xf32>
    %21 = arith.addf %18, %20 : vector<8x128xf32>
    %22 = arith.negf %21 : vector<8x128xf32>
    %23 = math.exp %22 : vector<8x128xf32>
    %cst_14 = arith.constant 1.000000e+00 : f32
    %24 = vector.broadcast %cst_14 : f32 to vector<8x128xf32>
    %25 = arith.addf %24, %23 : vector<8x128xf32>
    %26 = arith.divf %24, %25 : vector<8x128xf32>
    %c64_i32 = arith.constant 64 : i32
    %27 = tpu.dynamic_rotate %26 by %c64_i32 dim 1 : vector<8x128xf32>, i32 -> vector<8x128xf32>
    %28 = arith.mulf %27, %20 : vector<8x128xf32>
    %29 = arith.addf %18, %28 : vector<8x128xf32>
    %30 = math.tanh %29 : vector<8x128xf32>
    %c96_i32 = arith.constant 96 : i32
    %31 = tpu.dynamic_rotate %26 by %c96_i32 dim 1 : vector<8x128xf32>, i32 -> vector<8x128xf32>
    %c64_i32_15 = arith.constant 64 : i32
    %32 = tpu.dynamic_rotate %30 by %c64_i32_15 dim 1 : vector<8x128xf32>, i32 -> vector<8x128xf32>
    %cst_16 = arith.constant 1.000000e+00 : f32
    %33 = vector.broadcast %cst_16 : f32 to vector<8x128xf32>
    %34 = arith.subf %33, %31 : vector<8x128xf32>
    %35 = arith.mulf %34, %32 : vector<8x128xf32>
    %36 = arith.mulf %31, %14 : vector<8x128xf32>
    %37 = arith.addf %35, %36 : vector<8x128xf32>
    %38 = vector.broadcast %c0_i32 : i32 to vector<8x1xi32>
    %39 = arith.cmpi slt, %38, %9 : vector<8x1xi32>
    %40 = vector.shape_cast %39 : vector<8x1xi1> to vector<8x1xi1>
    %41 = vector.broadcast %40 : vector<8x1xi1> to vector<8x128xi1>
    %42 = arith.select %41, %37, %14 : vector<8x128xi1>, vector<8x128xf32>
    %c1_i32 = arith.constant 1 : i32
    %c8_i32_17 = arith.constant 8 : i32
    %43 = arith.muli %c1_i32, %c8_i32_17 : i32
    %44 = tpu.assume_multiple %43, 8 : i32
    %45 = arith.index_cast %44 : i32 to index
    %c0_18 = arith.constant 0 : index
    %46 = vector.load %arg7[%45, %c0_18] : memref<64x128xf32, #tpu.memory_space<vmem>>, vector<8x128xf32>
    %cst_19 = arith.constant dense<0.000000e+00> : vector<8x128xf32>
    %47 = tpu.matmul %42, %10, %cst_19 {dimension_numbers = #tpu.dot_dimension_numbers<[1], [0], [0], [1], [0, 0, 1, 1], [], []>} : vector<8x128xf32>, vector<128x128xf32>, vector<8x128xf32> -> vector<8x128xf32>
    %48 = arith.addf %47, %13 : vector<8x128xf32>
    %49 = arith.addf %46, %48 : vector<8x128xf32>
    %50 = arith.negf %49 : vector<8x128xf32>
    %51 = math.exp %50 : vector<8x128xf32>
    %cst_20 = arith.constant 1.000000e+00 : f32
    %52 = vector.broadcast %cst_20 : f32 to vector<8x128xf32>
    %53 = arith.addf %52, %51 : vector<8x128xf32>
    %54 = arith.divf %52, %53 : vector<8x128xf32>
    %c64_i32_21 = arith.constant 64 : i32
    %55 = tpu.dynamic_rotate %54 by %c64_i32_21 dim 1 : vector<8x128xf32>, i32 -> vector<8x128xf32>
    %56 = arith.mulf %55, %48 : vector<8x128xf32>
    %57 = arith.addf %46, %56 : vector<8x128xf32>
    %58 = math.tanh %57 : vector<8x128xf32>
    %c96_i32_22 = arith.constant 96 : i32
    %59 = tpu.dynamic_rotate %54 by %c96_i32_22 dim 1 : vector<8x128xf32>, i32 -> vector<8x128xf32>
    %c64_i32_23 = arith.constant 64 : i32
    %60 = tpu.dynamic_rotate %58 by %c64_i32_23 dim 1 : vector<8x128xf32>, i32 -> vector<8x128xf32>
    %cst_24 = arith.constant 1.000000e+00 : f32
    %61 = vector.broadcast %cst_24 : f32 to vector<8x128xf32>
    %62 = arith.subf %61, %59 : vector<8x128xf32>
    %63 = arith.mulf %62, %60 : vector<8x128xf32>
    %64 = arith.mulf %59, %42 : vector<8x128xf32>
    %65 = arith.addf %63, %64 : vector<8x128xf32>
    %66 = vector.broadcast %c1_i32 : i32 to vector<8x1xi32>
    %67 = arith.cmpi slt, %66, %9 : vector<8x1xi32>
    %68 = vector.shape_cast %67 : vector<8x1xi1> to vector<8x1xi1>
    %69 = vector.broadcast %68 : vector<8x1xi1> to vector<8x128xi1>
    %70 = arith.select %69, %65, %42 : vector<8x128xi1>, vector<8x128xf32>
    %c2_i32 = arith.constant 2 : i32
    %c8_i32_25 = arith.constant 8 : i32
    %71 = arith.muli %c2_i32, %c8_i32_25 : i32
    %72 = tpu.assume_multiple %71, 8 : i32
    %73 = arith.index_cast %72 : i32 to index
    %c0_26 = arith.constant 0 : index
    %74 = vector.load %arg7[%73, %c0_26] : memref<64x128xf32, #tpu.memory_space<vmem>>, vector<8x128xf32>
    %cst_27 = arith.constant dense<0.000000e+00> : vector<8x128xf32>
    %75 = tpu.matmul %70, %10, %cst_27 {dimension_numbers = #tpu.dot_dimension_numbers<[1], [0], [0], [1], [0, 0, 1, 1], [], []>} : vector<8x128xf32>, vector<128x128xf32>, vector<8x128xf32> -> vector<8x128xf32>
    %76 = arith.addf %75, %13 : vector<8x128xf32>
    %77 = arith.addf %74, %76 : vector<8x128xf32>
    %78 = arith.negf %77 : vector<8x128xf32>
    %79 = math.exp %78 : vector<8x128xf32>
    %cst_28 = arith.constant 1.000000e+00 : f32
    %80 = vector.broadcast %cst_28 : f32 to vector<8x128xf32>
    %81 = arith.addf %80, %79 : vector<8x128xf32>
    %82 = arith.divf %80, %81 : vector<8x128xf32>
    %c64_i32_29 = arith.constant 64 : i32
    %83 = tpu.dynamic_rotate %82 by %c64_i32_29 dim 1 : vector<8x128xf32>, i32 -> vector<8x128xf32>
    %84 = arith.mulf %83, %76 : vector<8x128xf32>
    %85 = arith.addf %74, %84 : vector<8x128xf32>
    %86 = math.tanh %85 : vector<8x128xf32>
    %c96_i32_30 = arith.constant 96 : i32
    %87 = tpu.dynamic_rotate %82 by %c96_i32_30 dim 1 : vector<8x128xf32>, i32 -> vector<8x128xf32>
    %c64_i32_31 = arith.constant 64 : i32
    %88 = tpu.dynamic_rotate %86 by %c64_i32_31 dim 1 : vector<8x128xf32>, i32 -> vector<8x128xf32>
    %cst_32 = arith.constant 1.000000e+00 : f32
    %89 = vector.broadcast %cst_32 : f32 to vector<8x128xf32>
    %90 = arith.subf %89, %87 : vector<8x128xf32>
    %91 = arith.mulf %90, %88 : vector<8x128xf32>
    %92 = arith.mulf %87, %70 : vector<8x128xf32>
    %93 = arith.addf %91, %92 : vector<8x128xf32>
    %94 = vector.broadcast %c2_i32 : i32 to vector<8x1xi32>
    %95 = arith.cmpi slt, %94, %9 : vector<8x1xi32>
    %96 = vector.shape_cast %95 : vector<8x1xi1> to vector<8x1xi1>
    %97 = vector.broadcast %96 : vector<8x1xi1> to vector<8x128xi1>
    %98 = arith.select %97, %93, %70 : vector<8x128xi1>, vector<8x128xf32>
    %c3_i32 = arith.constant 3 : i32
    %c8_i32_33 = arith.constant 8 : i32
    %99 = arith.muli %c3_i32, %c8_i32_33 : i32
    %100 = tpu.assume_multiple %99, 8 : i32
    %101 = arith.index_cast %100 : i32 to index
    %c0_34 = arith.constant 0 : index
    %102 = vector.load %arg7[%101, %c0_34] : memref<64x128xf32, #tpu.memory_space<vmem>>, vector<8x128xf32>
    %cst_35 = arith.constant dense<0.000000e+00> : vector<8x128xf32>
    %103 = tpu.matmul %98, %10, %cst_35 {dimension_numbers = #tpu.dot_dimension_numbers<[1], [0], [0], [1], [0, 0, 1, 1], [], []>} : vector<8x128xf32>, vector<128x128xf32>, vector<8x128xf32> -> vector<8x128xf32>
    %104 = arith.addf %103, %13 : vector<8x128xf32>
    %105 = arith.addf %102, %104 : vector<8x128xf32>
    %106 = arith.negf %105 : vector<8x128xf32>
    %107 = math.exp %106 : vector<8x128xf32>
    %cst_36 = arith.constant 1.000000e+00 : f32
    %108 = vector.broadcast %cst_36 : f32 to vector<8x128xf32>
    %109 = arith.addf %108, %107 : vector<8x128xf32>
    %110 = arith.divf %108, %109 : vector<8x128xf32>
    %c64_i32_37 = arith.constant 64 : i32
    %111 = tpu.dynamic_rotate %110 by %c64_i32_37 dim 1 : vector<8x128xf32>, i32 -> vector<8x128xf32>
    %112 = arith.mulf %111, %104 : vector<8x128xf32>
    %113 = arith.addf %102, %112 : vector<8x128xf32>
    %114 = math.tanh %113 : vector<8x128xf32>
    %c96_i32_38 = arith.constant 96 : i32
    %115 = tpu.dynamic_rotate %110 by %c96_i32_38 dim 1 : vector<8x128xf32>, i32 -> vector<8x128xf32>
    %c64_i32_39 = arith.constant 64 : i32
    %116 = tpu.dynamic_rotate %114 by %c64_i32_39 dim 1 : vector<8x128xf32>, i32 -> vector<8x128xf32>
    %cst_40 = arith.constant 1.000000e+00 : f32
    %117 = vector.broadcast %cst_40 : f32 to vector<8x128xf32>
    %118 = arith.subf %117, %115 : vector<8x128xf32>
    %119 = arith.mulf %118, %116 : vector<8x128xf32>
    %120 = arith.mulf %115, %98 : vector<8x128xf32>
    %121 = arith.addf %119, %120 : vector<8x128xf32>
    %122 = vector.broadcast %c3_i32 : i32 to vector<8x1xi32>
    %123 = arith.cmpi slt, %122, %9 : vector<8x1xi32>
    %124 = vector.shape_cast %123 : vector<8x1xi1> to vector<8x1xi1>
    %125 = vector.broadcast %124 : vector<8x1xi1> to vector<8x128xi1>
    %126 = arith.select %125, %121, %98 : vector<8x128xi1>, vector<8x128xf32>
    %c4_i32 = arith.constant 4 : i32
    %c8_i32_41 = arith.constant 8 : i32
    %127 = arith.muli %c4_i32, %c8_i32_41 : i32
    %128 = tpu.assume_multiple %127, 8 : i32
    %129 = arith.index_cast %128 : i32 to index
    %c0_42 = arith.constant 0 : index
    %130 = vector.load %arg7[%129, %c0_42] : memref<64x128xf32, #tpu.memory_space<vmem>>, vector<8x128xf32>
    %cst_43 = arith.constant dense<0.000000e+00> : vector<8x128xf32>
    %131 = tpu.matmul %126, %10, %cst_43 {dimension_numbers = #tpu.dot_dimension_numbers<[1], [0], [0], [1], [0, 0, 1, 1], [], []>} : vector<8x128xf32>, vector<128x128xf32>, vector<8x128xf32> -> vector<8x128xf32>
    %132 = arith.addf %131, %13 : vector<8x128xf32>
    %133 = arith.addf %130, %132 : vector<8x128xf32>
    %134 = arith.negf %133 : vector<8x128xf32>
    %135 = math.exp %134 : vector<8x128xf32>
    %cst_44 = arith.constant 1.000000e+00 : f32
    %136 = vector.broadcast %cst_44 : f32 to vector<8x128xf32>
    %137 = arith.addf %136, %135 : vector<8x128xf32>
    %138 = arith.divf %136, %137 : vector<8x128xf32>
    %c64_i32_45 = arith.constant 64 : i32
    %139 = tpu.dynamic_rotate %138 by %c64_i32_45 dim 1 : vector<8x128xf32>, i32 -> vector<8x128xf32>
    %140 = arith.mulf %139, %132 : vector<8x128xf32>
    %141 = arith.addf %130, %140 : vector<8x128xf32>
    %142 = math.tanh %141 : vector<8x128xf32>
    %c96_i32_46 = arith.constant 96 : i32
    %143 = tpu.dynamic_rotate %138 by %c96_i32_46 dim 1 : vector<8x128xf32>, i32 -> vector<8x128xf32>
    %c64_i32_47 = arith.constant 64 : i32
    %144 = tpu.dynamic_rotate %142 by %c64_i32_47 dim 1 : vector<8x128xf32>, i32 -> vector<8x128xf32>
    %cst_48 = arith.constant 1.000000e+00 : f32
    %145 = vector.broadcast %cst_48 : f32 to vector<8x128xf32>
    %146 = arith.subf %145, %143 : vector<8x128xf32>
    %147 = arith.mulf %146, %144 : vector<8x128xf32>
    %148 = arith.mulf %143, %126 : vector<8x128xf32>
    %149 = arith.addf %147, %148 : vector<8x128xf32>
    %150 = vector.broadcast %c4_i32 : i32 to vector<8x1xi32>
    %151 = arith.cmpi slt, %150, %9 : vector<8x1xi32>
    %152 = vector.shape_cast %151 : vector<8x1xi1> to vector<8x1xi1>
    %153 = vector.broadcast %152 : vector<8x1xi1> to vector<8x128xi1>
    %154 = arith.select %153, %149, %126 : vector<8x128xi1>, vector<8x128xf32>
    %c5_i32 = arith.constant 5 : i32
    %c8_i32_49 = arith.constant 8 : i32
    %155 = arith.muli %c5_i32, %c8_i32_49 : i32
    %156 = tpu.assume_multiple %155, 8 : i32
    %157 = arith.index_cast %156 : i32 to index
    %c0_50 = arith.constant 0 : index
    %158 = vector.load %arg7[%157, %c0_50] : memref<64x128xf32, #tpu.memory_space<vmem>>, vector<8x128xf32>
    %cst_51 = arith.constant dense<0.000000e+00> : vector<8x128xf32>
    %159 = tpu.matmul %154, %10, %cst_51 {dimension_numbers = #tpu.dot_dimension_numbers<[1], [0], [0], [1], [0, 0, 1, 1], [], []>} : vector<8x128xf32>, vector<128x128xf32>, vector<8x128xf32> -> vector<8x128xf32>
    %160 = arith.addf %159, %13 : vector<8x128xf32>
    %161 = arith.addf %158, %160 : vector<8x128xf32>
    %162 = arith.negf %161 : vector<8x128xf32>
    %163 = math.exp %162 : vector<8x128xf32>
    %cst_52 = arith.constant 1.000000e+00 : f32
    %164 = vector.broadcast %cst_52 : f32 to vector<8x128xf32>
    %165 = arith.addf %164, %163 : vector<8x128xf32>
    %166 = arith.divf %164, %165 : vector<8x128xf32>
    %c64_i32_53 = arith.constant 64 : i32
    %167 = tpu.dynamic_rotate %166 by %c64_i32_53 dim 1 : vector<8x128xf32>, i32 -> vector<8x128xf32>
    %168 = arith.mulf %167, %160 : vector<8x128xf32>
    %169 = arith.addf %158, %168 : vector<8x128xf32>
    %170 = math.tanh %169 : vector<8x128xf32>
    %c96_i32_54 = arith.constant 96 : i32
    %171 = tpu.dynamic_rotate %166 by %c96_i32_54 dim 1 : vector<8x128xf32>, i32 -> vector<8x128xf32>
    %c64_i32_55 = arith.constant 64 : i32
    %172 = tpu.dynamic_rotate %170 by %c64_i32_55 dim 1 : vector<8x128xf32>, i32 -> vector<8x128xf32>
    %cst_56 = arith.constant 1.000000e+00 : f32
    %173 = vector.broadcast %cst_56 : f32 to vector<8x128xf32>
    %174 = arith.subf %173, %171 : vector<8x128xf32>
    %175 = arith.mulf %174, %172 : vector<8x128xf32>
    %176 = arith.mulf %171, %154 : vector<8x128xf32>
    %177 = arith.addf %175, %176 : vector<8x128xf32>
    %178 = vector.broadcast %c5_i32 : i32 to vector<8x1xi32>
    %179 = arith.cmpi slt, %178, %9 : vector<8x1xi32>
    %180 = vector.shape_cast %179 : vector<8x1xi1> to vector<8x1xi1>
    %181 = vector.broadcast %180 : vector<8x1xi1> to vector<8x128xi1>
    %182 = arith.select %181, %177, %154 : vector<8x128xi1>, vector<8x128xf32>
    %c6_i32 = arith.constant 6 : i32
    %c8_i32_57 = arith.constant 8 : i32
    %183 = arith.muli %c6_i32, %c8_i32_57 : i32
    %184 = tpu.assume_multiple %183, 8 : i32
    %185 = arith.index_cast %184 : i32 to index
    %c0_58 = arith.constant 0 : index
    %186 = vector.load %arg7[%185, %c0_58] : memref<64x128xf32, #tpu.memory_space<vmem>>, vector<8x128xf32>
    %cst_59 = arith.constant dense<0.000000e+00> : vector<8x128xf32>
    %187 = tpu.matmul %182, %10, %cst_59 {dimension_numbers = #tpu.dot_dimension_numbers<[1], [0], [0], [1], [0, 0, 1, 1], [], []>} : vector<8x128xf32>, vector<128x128xf32>, vector<8x128xf32> -> vector<8x128xf32>
    %188 = arith.addf %187, %13 : vector<8x128xf32>
    %189 = arith.addf %186, %188 : vector<8x128xf32>
    %190 = arith.negf %189 : vector<8x128xf32>
    %191 = math.exp %190 : vector<8x128xf32>
    %cst_60 = arith.constant 1.000000e+00 : f32
    %192 = vector.broadcast %cst_60 : f32 to vector<8x128xf32>
    %193 = arith.addf %192, %191 : vector<8x128xf32>
    %194 = arith.divf %192, %193 : vector<8x128xf32>
    %c64_i32_61 = arith.constant 64 : i32
    %195 = tpu.dynamic_rotate %194 by %c64_i32_61 dim 1 : vector<8x128xf32>, i32 -> vector<8x128xf32>
    %196 = arith.mulf %195, %188 : vector<8x128xf32>
    %197 = arith.addf %186, %196 : vector<8x128xf32>
    %198 = math.tanh %197 : vector<8x128xf32>
    %c96_i32_62 = arith.constant 96 : i32
    %199 = tpu.dynamic_rotate %194 by %c96_i32_62 dim 1 : vector<8x128xf32>, i32 -> vector<8x128xf32>
    %c64_i32_63 = arith.constant 64 : i32
    %200 = tpu.dynamic_rotate %198 by %c64_i32_63 dim 1 : vector<8x128xf32>, i32 -> vector<8x128xf32>
    %cst_64 = arith.constant 1.000000e+00 : f32
    %201 = vector.broadcast %cst_64 : f32 to vector<8x128xf32>
    %202 = arith.subf %201, %199 : vector<8x128xf32>
    %203 = arith.mulf %202, %200 : vector<8x128xf32>
    %204 = arith.mulf %199, %182 : vector<8x128xf32>
    %205 = arith.addf %203, %204 : vector<8x128xf32>
    %206 = vector.broadcast %c6_i32 : i32 to vector<8x1xi32>
    %207 = arith.cmpi slt, %206, %9 : vector<8x1xi32>
    %208 = vector.shape_cast %207 : vector<8x1xi1> to vector<8x1xi1>
    %209 = vector.broadcast %208 : vector<8x1xi1> to vector<8x128xi1>
    %210 = arith.select %209, %205, %182 : vector<8x128xi1>, vector<8x128xf32>
    %c7_i32 = arith.constant 7 : i32
    %c8_i32_65 = arith.constant 8 : i32
    %211 = arith.muli %c7_i32, %c8_i32_65 : i32
    %212 = tpu.assume_multiple %211, 8 : i32
    %213 = arith.index_cast %212 : i32 to index
    %c0_66 = arith.constant 0 : index
    %214 = vector.load %arg7[%213, %c0_66] : memref<64x128xf32, #tpu.memory_space<vmem>>, vector<8x128xf32>
    %cst_67 = arith.constant dense<0.000000e+00> : vector<8x128xf32>
    %215 = tpu.matmul %210, %10, %cst_67 {dimension_numbers = #tpu.dot_dimension_numbers<[1], [0], [0], [1], [0, 0, 1, 1], [], []>} : vector<8x128xf32>, vector<128x128xf32>, vector<8x128xf32> -> vector<8x128xf32>
    %216 = arith.addf %215, %13 : vector<8x128xf32>
    %217 = arith.addf %214, %216 : vector<8x128xf32>
    %218 = arith.negf %217 : vector<8x128xf32>
    %219 = math.exp %218 : vector<8x128xf32>
    %cst_68 = arith.constant 1.000000e+00 : f32
    %220 = vector.broadcast %cst_68 : f32 to vector<8x128xf32>
    %221 = arith.addf %220, %219 : vector<8x128xf32>
    %222 = arith.divf %220, %221 : vector<8x128xf32>
    %c64_i32_69 = arith.constant 64 : i32
    %223 = tpu.dynamic_rotate %222 by %c64_i32_69 dim 1 : vector<8x128xf32>, i32 -> vector<8x128xf32>
    %224 = arith.mulf %223, %216 : vector<8x128xf32>
    %225 = arith.addf %214, %224 : vector<8x128xf32>
    %226 = math.tanh %225 : vector<8x128xf32>
    %c96_i32_70 = arith.constant 96 : i32
    %227 = tpu.dynamic_rotate %222 by %c96_i32_70 dim 1 : vector<8x128xf32>, i32 -> vector<8x128xf32>
    %c64_i32_71 = arith.constant 64 : i32
    %228 = tpu.dynamic_rotate %226 by %c64_i32_71 dim 1 : vector<8x128xf32>, i32 -> vector<8x128xf32>
    %cst_72 = arith.constant 1.000000e+00 : f32
    %229 = vector.broadcast %cst_72 : f32 to vector<8x128xf32>
    %230 = arith.subf %229, %227 : vector<8x128xf32>
    %231 = arith.mulf %230, %228 : vector<8x128xf32>
    %232 = arith.mulf %227, %210 : vector<8x128xf32>
    %233 = arith.addf %231, %232 : vector<8x128xf32>
    %234 = vector.broadcast %c7_i32 : i32 to vector<8x1xi32>
    %235 = arith.cmpi slt, %234, %9 : vector<8x1xi32>
    %236 = vector.shape_cast %235 : vector<8x1xi1> to vector<8x1xi1>
    %237 = vector.broadcast %236 : vector<8x1xi1> to vector<8x128xi1>
    %238 = arith.select %237, %233, %210 : vector<8x128xi1>, vector<8x128xf32>
    %c8_i32_73 = arith.constant 8 : i32
    %c0_74 = arith.constant 0 : index
    %c0_75 = arith.constant 0 : index
    %239 = vector.load %arg6[%c0_74, %c0_75] : memref<8x128xf32, #tpu.memory_space<vmem>>, vector<8x128xf32>
    tpu.vector_store %arg6[%c0_74, %c0_75], %238 {strides = array<i32>} : memref<8x128xf32, #tpu.memory_space<vmem>>, vector<8x128xf32>,
    return
  }
  func.func @transform_0(%arg0: i32) -> (i32, i32) {
    %c0_i32 = arith.constant 0 : i32
    %c0_i32_0 = arith.constant 0 : i32
    return %arg0, %c0_i32 : i32, i32
  }
  func.func @transform_1(%arg0: i32) -> (i32, i32) {
    %c0_i32 = arith.constant 0 : i32
    %c0_i32_0 = arith.constant 0 : i32
    return %arg0, %c0_i32 : i32, i32
  }
  func.func @transform_2(%arg0: i32) -> (i32, i32) {
    %c0_i32 = arith.constant 0 : i32
    %c0_i32_0 = arith.constant 0 : i32
    %c0_i32_1 = arith.constant 0 : i32
    return %c0_i32, %c0_i32_0 : i32, i32
  }
  func.func @transform_3(%arg0: i32) -> (i32, i32) {
    %c0_i32 = arith.constant 0 : i32
    %c0_i32_0 = arith.constant 0 : i32
    %c0_i32_1 = arith.constant 0 : i32
    return %c0_i32, %c0_i32_0 : i32, i32
  }
  func.func @transform_4(%arg0: i32) -> (i32, i32) {
    %c0_i32 = arith.constant 0 : i32
    %c0_i32_0 = arith.constant 0 : i32
    %c0_i32_1 = arith.constant 0 : i32
    return %c0_i32, %c0_i32_0 : i32, i32
  }
  func.func @transform_5(%arg0: i32) -> (i32, i32) {
    %c0_i32 = arith.constant 0 : i32
    %c0_i32_0 = arith.constant 0 : i32
    return %arg0, %c0_i32 : i32, i32
  }
}

</mosaic_0001>

<llo_original>
// kernel: tpu_custom_call.1
$region0: #{tpu_custom_call.1}
  #allocation0 [shape = 'u32[]', space=smem, size = 0x4, offset = 0x4, fixed_abs, tag = 'smem constant byte address 0x4 - core index']
  #allocation1 [shape = 'u32[144,128]{1,0:T(1,128)}', space=vmem, size = 0x12000, scoped, tag = 'internal scratch']
  #allocation2 [shape = 'f32[64,128]{1,0:T(8,128)}', space=vmem, size = 0x8000, scoped, tag = 'scratch operand']
  %s0 = inlined_call_operand.vmem [shape: s32[64,1], index: 0, kind: input, shape index: {}]
  %s1 = inlined_call_operand.vmem [shape: s32[8,1], index: 1, kind: input, shape index: {}]
  %s2 = inlined_call_operand.hbm [shape: f32[128,128], index: 2, kind: input, shape index: {}]
  %s3 = inlined_call_operand.hbm [shape: f32[128,128], index: 3, kind: input, shape index: {}]
  %s4 = inlined_call_operand.vmem [shape: f32[1,128], index: 4, kind: input, shape index: {}]
  %s5 = inlined_call_operand.hbm [shape: f32[8,128], index: 5, kind: output, shape index: {}]
  %s6 = sld [smem:[#allocation0]]
  $region38: #{tpu_custom_call.1} parent=0
    _
  %s8 = ssub.s32 1, %s6
  %s9 = scalar_select 0, %s8, %s6
  $region1: #{tpu_custom_call.1} parent=0
    #allocation3 [shape = 'u8[65536]{0}', space=vmem, size = 0x10000, scoped, tag = 'input window, operand 2, single buffered']
    #allocation4 [shape = 's32[1]{0}', space=sflag, size = 0x4, scoped, tag = 'scoped memory for tpu_custom_call.1']
    #allocation5 [shape = 's32[1]{0}', space=sflag, size = 0x4, scoped, tag = 'scoped memory for tpu_custom_call.1']
    #allocation6 [shape = 'u8[65536]{0}', space=vmem, size = 0x10000, scoped, tag = 'input window, operand 3, single buffered']
    #allocation7 [shape = 's32[1]{0}', space=sflag, size = 0x4, scoped, tag = 'scoped memory for tpu_custom_call.1']
    #allocation8 [shape = 'u8[4096]{0}', space=vmem, size = 0x1000, scoped, tag = 'output window, operand 0, single buffered']
    %10 = vsyncpa [#allocation4], 0
    %11 = vsyncpa [#allocation7], 0
    %12 = vsyncpa [#allocation5], 0
    // Predicated region
    $region2: #{tpu_custom_call.1} parent=1 // pred_check
      _
    $region3: #{tpu_custom_call.1} parent=1 // pred_check_branch
      %14 = sbr.rel (0) target = $region5
    $region4: #{tpu_custom_call.1} parent=1 // pred_region
      _
    $region5: #{tpu_custom_call.1} parent=1 // pred_fallthru
      _
    // Predicated region
    $region6: #{tpu_custom_call.1} parent=1 // pred_check
      _
    $region7: #{tpu_custom_call.1} parent=1 // pred_check_branch
      %16 = sbr.rel (0) target = $region9
    $region8: #{tpu_custom_call.1} parent=1 // pred_region
      _
    $region9: #{tpu_custom_call.1} parent=1 // pred_fallthru
      _
    // Predicated region
    $region10: #{tpu_custom_call.1} parent=1 // pred_check
      _
    $region11: #{tpu_custom_call.1} parent=1 // pred_check_branch
      %18 = sbr.rel (0) target = $region13
    $region12: #{tpu_custom_call.1} parent=1 // pred_region
      %s20 = ssub.s32 2048, 2048
      %21 = vsyncadd [#allocation4], %s20
      %s22 = sshll.u32 [#allocation3], 4
      %s23 = int_to_ptr.vmem [resolvable:$true] %s22
      %28 = dma.hbm_to_vmem [thread:$0]  %s2, 2048, %s23, [#allocation4], 128, 128, 8
    $region13: #{tpu_custom_call.1} parent=1 // pred_fallthru
      _
    // Predicated region
    $region14: #{tpu_custom_call.1} parent=1 // pred_check
      _
    $region15: #{tpu_custom_call.1} parent=1 // pred_check_branch
      %30 = sbr.rel (0) target = $region17
    $region16: #{tpu_custom_call.1} parent=1 // pred_region
      %s32 = ssub.s32 2048, 2048
      %33 = vsyncadd [#allocation7], %s32
      %s34 = sshll.u32 [#allocation6], 4
      %s35 = int_to_ptr.vmem [resolvable:$true] %s34
      %40 = dma.hbm_to_vmem [thread:$0]  %s3, 2048, %s35, [#allocation7], 128, 128, 8
    $region17: #{tpu_custom_call.1} parent=1 // pred_fallthru
      _
    // Predicated region
    $region18: #{tpu_custom_call.1} parent=1 // pred_check
      _
    $region19: #{tpu_custom_call.1} parent=1 // pred_check_branch
      %42 = sbr.rel (0) target = $region21
    $region20: #{tpu_custom_call.1} parent=1 // pred_region
      _
    $region21: #{tpu_custom_call.1} parent=1 // pred_fallthru
      _
    // Predicated region
    $region22: #{tpu_custom_call.1} parent=1 // pred_check
      _
    $region23: #{tpu_custom_call.1} parent=1 // pred_check_branch
      %44 = sbr.rel (0) target = $region25
    $region24: #{tpu_custom_call.1} parent=1 // pred_region
      %45 = dma.done [#allocation4], 2048
    $region25: #{tpu_custom_call.1} parent=1 // pred_fallthru
      _
    // Predicated region
    $region26: #{tpu_custom_call.1} parent=1 // pred_check
      _
    $region27: #{tpu_custom_call.1} parent=1 // pred_check_branch
      %47 = sbr.rel (0) target = $region29
    $region28: #{tpu_custom_call.1} parent=1 // pred_region
      %48 = dma.done [#allocation7], 2048
    $region29: #{tpu_custom_call.1} parent=1 // pred_fallthru
      _
    %v49 = vld [vmem:[%s0] sm:$0xff]
    %v50 = vld [vmem:[%s0 + $0x8] sm:$0xff]
    %v51 = vld [vmem:[%s0 + $0x10] sm:$0xff]
    %v52 = vld [vmem:[%s0 + $0x18] sm:$0xff]
    %v53 = vld [vmem:[%s0 + $0x20] sm:$0xff]
    %v54 = vld [vmem:[%s0 + $0x28] sm:$0xff]
    %v55 = vld [vmem:[%s0 + $0x30] sm:$0xff]
    %v56 = vld [vmem:[%s0 + $0x38] sm:$0xff]
    %v57 = vlaneseq
    %v58 = vand.u32 %v57, 127
    %59 = vset.pattern.permute.xlu0 0
    %60 = vperm.xlu0 %59, %v49
    %v61 = vpop.permute.xlu0 %60
    %62 = vset.pattern.permute.xlu0 0
    %63 = vperm.xlu0 %62, %v50
    %v64 = vpop.permute.xlu0 %63
    %65 = vset.pattern.permute.xlu0 0
    %66 = vperm.xlu0 %65, %v51
    %v67 = vpop.permute.xlu0 %66
    %68 = vset.pattern.permute.xlu0 0
    %69 = vperm.xlu0 %68, %v52
    %v70 = vpop.permute.xlu0 %69
    %71 = vset.pattern.permute.xlu0 0
    %72 = vperm.xlu0 %71, %v53
    %v73 = vpop.permute.xlu0 %72
    %74 = vset.pattern.permute.xlu0 0
    %75 = vperm.xlu0 %74, %v54
    %v76 = vpop.permute.xlu0 %75
    %77 = vset.pattern.permute.xlu0 0
    %78 = vperm.xlu0 %77, %v55
    %v79 = vpop.permute.xlu0 %78
    %80 = vset.pattern.permute.xlu0 0
    %81 = vperm.xlu0 %80, %v56
    %v82 = vpop.permute.xlu0 %81
    %vm83 = vcmp.eq.s32.totalorder %v58, %v61
    %vm84 = vcmp.eq.s32.totalorder %v58, %v64
    %vm85 = vcmp.eq.s32.totalorder %v58, %v67
    %vm86 = vcmp.eq.s32.totalorder %v58, %v70
    %vm87 = vcmp.eq.s32.totalorder %v58, %v73
    %vm88 = vcmp.eq.s32.totalorder %v58, %v76
    %vm89 = vcmp.eq.s32.totalorder %v58, %v79
    %vm90 = vcmp.eq.s32.totalorder %v58, %v82
    %v91 = vsel %vm83, 1, 0
    %v92 = vsel %vm84, 1, 0
    %v93 = vsel %vm85, 1, 0
    %v94 = vsel %vm86, 1, 0
    %v95 = vsel %vm87, 1, 0
    %v96 = vsel %vm88, 1, 0
    %v97 = vsel %vm89, 1, 0
    %v98 = vsel %vm90, 1, 0
    %v99 = vcvt.s32.f32 %v91
    %v100 = vcvt.s32.f32 %v92
    %v101 = vcvt.s32.f32 %v93
    %v102 = vcvt.s32.f32 %v94
    %v103 = vcvt.s32.f32 %v95
    %v104 = vcvt.s32.f32 %v96
    %v105 = vcvt.s32.f32 %v97
    %v106 = vcvt.s32.f32 %v98
    %v107 = vld [vmem:[#allocation3] sm:$0xff]
    %v108 = vld [vmem:[#allocation3 + $0x8] sm:$0xff]
    %v109 = vld [vmem:[#allocation3 + $0x10] sm:$0xff]
    %v110 = vld [vmem:[#allocation3 + $0x18] sm:$0xff]
    %v111 = vld [vmem:[#allocation3 + $0x20] sm:$0xff]
    %v112 = vld [vmem:[#allocation3 + $0x28] sm:$0xff]
    %v113 = vld [vmem:[#allocation3 + $0x30] sm:$0xff]
    %v114 = vld [vmem:[#allocation3 + $0x38] sm:$0xff]
    %v115 = vld [vmem:[#allocation3 + $0x40] sm:$0xff]
    %v116 = vld [vmem:[#allocation3 + $0x48] sm:$0xff]
    %v117 = vld [vmem:[#allocation3 + $0x50] sm:$0xff]
    %v118 = vld [vmem:[#allocation3 + $0x58] sm:$0xff]
    %v119 = vld [vmem:[#allocation3 + $0x60] sm:$0xff]
    %v120 = vld [vmem:[#allocation3 + $0x68] sm:$0xff]
    %v121 = vld [vmem:[#allocation3 + $0x70] sm:$0xff]
    %v122 = vld [vmem:[#allocation3 + $0x78] sm:$0xff]
    %123 = vmatprep.subr.mxu0 0.0
    %124 = vmatpush1.msra.mxu0 %v107
    %125 = vmatprep.subr.mxu0 0.0
    %126 = vmatpush1.msra.mxu0 %v108
    %127 = vmatprep.subr.mxu0 0.0
    %128 = vmatpush1.msra.mxu0 %v109
    %129 = vmatprep.subr.mxu0 0.0
    %130 = vmatpush1.msra.mxu0 %v110
    %131 = vmatprep.subr.mxu0 0.0
    %132 = vmatpush1.msra.mxu0 %v111
    %133 = vmatprep.subr.mxu0 0.0
    %134 = vmatpush1.msra.mxu0 %v112
    %135 = vmatprep.subr.mxu0 0.0
    %136 = vmatpush1.msra.mxu0 %v113
    %137 = vmatprep.subr.mxu0 0.0
    %138 = vmatpush1.msra.mxu0 %v114
    %139 = vmatprep.subr.mxu0 0.0
    %140 = vmatpush1.msra.mxu0 %v115
    %141 = vmatprep.subr.mxu0 0.0
    %142 = vmatpush1.msra.mxu0 %v116
    %143 = vmatprep.subr.mxu0 0.0
    %144 = vmatpush1.msra.mxu0 %v117
    %145 = vmatprep.subr.mxu0 0.0
    %146 = vmatpush1.msra.mxu0 %v118
    %147 = vmatprep.subr.mxu0 0.0
    %148 = vmatpush1.msra.mxu0 %v119
    %149 = vmatprep.subr.mxu0 0.0
    %150 = vmatpush1.msra.mxu0 %v120
    %151 = vmatprep.subr.mxu0 0.0
    %152 = vmatpush1.msra.mxu0 %v121
    %153 = vmatprep.subr.mxu0 0.0
    %154 = vmatpush1.msra.mxu0 %v122
    %155 = vmatprep.subr.mxu0 0.0
    %156 = vmatpush1.msra.mxu0 0.0
    %157 = vmatprep.subr.mxu0 0.0
    %158 = vmatpush1.msra.mxu0 0.0
    %159 = vmatprep.subr.mxu0 0.0
    %160 = vmatpush1.msra.mxu0 0.0
    %161 = vmatprep.subr.mxu0 0.0
    %162 = vmatpush1.msra.mxu0 0.0
    %163 = vmatprep.subr.mxu0 0.0
    %164 = vmatpush1.msra.mxu0 0.0
    %165 = vmatprep.subr.mxu0 0.0
    %166 = vmatpush1.msra.mxu0 0.0
    %167 = vmatprep.subr.mxu0 0.0
    %168 = vmatpush1.msra.mxu0 0.0
    %169 = vmatprep.subr.mxu0 0.0
    %170 = vmatpush1.msra.mxu0 0.0
    %171 = vmatprep.subr.mxu0 0.0
    %172 = vmatpush1.msra.mxu0 0.0
    %173 = vmatprep.subr.mxu0 0.0
    %174 = vmatpush1.msra.mxu0 0.0
    %175 = vmatprep.subr.mxu0 0.0
    %176 = vmatpush1.msra.mxu0 0.0
    %177 = vmatprep.subr.mxu0 0.0
    %178 = vmatpush1.msra.mxu0 0.0
    %179 = vmatprep.subr.mxu0 0.0
    %180 = vmatpush1.msra.mxu0 0.0
    %181 = vmatprep.subr.mxu0 0.0
    %182 = vmatpush1.msra.mxu0 0.0
    %183 = vmatprep.subr.mxu0 0.0
    %184 = vmatpush1.msra.mxu0 0.0
    %185 = vmatprep.subr.mxu0 0.0
    %186 = vmatpush1.msra.mxu0 0.0
    %187 = vmatprep.mubr.f32.mxu0 0.0
    %188 = vmatmul.mubr.f32.gmra.mrb[0].mxu0 %v99
    %v189 = vpop.f32.mrb[0].mxu0
    %v190 = vadd.f32 0.0, %v189
    %v191 = vpop.f32.mrb[0].mxu0
    %192 = vmatprep.mubr.f32.mxu0 0.0
    %193 = vmatmul.mubr.f32.gmra.mrb[0].mxu0 %v100
    %v194 = vpop.f32.mrb[0].mxu0
    %v195 = vadd.f32 0.0, %v194
    %v196 = vpop.f32.mrb[0].mxu0
    %197 = vmatprep.mubr.f32.mxu0 0.0
    %198 = vmatmul.mubr.f32.gmra.mrb[0].mxu0 %v101
    %v199 = vpop.f32.mrb[0].mxu0
    %v200 = vadd.f32 0.0, %v199
    %v201 = vpop.f32.mrb[0].mxu0
    %202 = vmatprep.mubr.f32.mxu0 0.0
    %203 = vmatmul.mubr.f32.gmra.mrb[0].mxu0 %v102
    %v204 = vpop.f32.mrb[0].mxu0
    %v205 = vadd.f32 0.0, %v204
    %v206 = vpop.f32.mrb[0].mxu0
    %207 = vmatprep.mubr.f32.mxu0 0.0
    %208 = vmatmul.mubr.f32.gmra.mrb[0].mxu0 %v103
    %v209 = vpop.f32.mrb[0].mxu0
    %v210 = vadd.f32 0.0, %v209
    %v211 = vpop.f32.mrb[0].mxu0
    %212 = vmatprep.mubr.f32.mxu0 0.0
    %213 = vmatmul.mubr.f32.gmra.mrb[0].mxu0 %v104
    %v214 = vpop.f32.mrb[0].mxu0
    %v215 = vadd.f32 0.0, %v214
    %v216 = vpop.f32.mrb[0].mxu0
    %217 = vmatprep.mubr.f32.mxu0 0.0
    %218 = vmatmul.mubr.f32.gmra.mrb[0].mxu0 %v105
    %v219 = vpop.f32.mrb[0].mxu0
    %v220 = vadd.f32 0.0, %v219
    %v221 = vpop.f32.mrb[0].mxu0
    %222 = vmatprep.mubr.f32.mxu0 0.0
    %223 = vmatmul.mubr.f32.gmra.mrb[0].mxu0 %v106
    %v224 = vpop.f32.mrb[0].mxu0
    %v225 = vadd.f32 0.0, %v224
    %v226 = vpop.f32.mrb[0].mxu0
    %227 = vdwg.mxu0
    %228 = vst [vmem:[#allocation2] sm:$0xff] %v190
    %229 = vst [vmem:[#allocation2 + $0x8] sm:$0xff] %v195
    %230 = vst [vmem:[#allocation2 + $0x10] sm:$0xff] %v200
    %231 = vst [vmem:[#allocation2 + $0x18] sm:$0xff] %v205
    %232 = vst [vmem:[#allocation2 + $0x20] sm:$0xff] %v210
    %233 = vst [vmem:[#allocation2 + $0x28] sm:$0xff] %v215
    %234 = vst [vmem:[#allocation2 + $0x30] sm:$0xff] %v220
    %235 = vst [vmem:[#allocation2 + $0x38] sm:$0xff] %v225
    %v236 = vld [vmem:[%s1] sm:$0xff]
    %v237 = vld [vmem:[#allocation6] sm:$0xff]
    %v238 = vld [vmem:[#allocation6 + $0x8] sm:$0xff]
    %v239 = vld [vmem:[#allocation6 + $0x10] sm:$0xff]
    %v240 = vld [vmem:[#allocation6 + $0x18] sm:$0xff]
    %v241 = vld [vmem:[#allocation6 + $0x20] sm:$0xff]
    %v242 = vld [vmem:[#allocation6 + $0x28] sm:$0xff]
    %v243 = vld [vmem:[#allocation6 + $0x30] sm:$0xff]
    %v244 = vld [vmem:[#allocation6 + $0x38] sm:$0xff]
    %v245 = vld [vmem:[#allocation6 + $0x40] sm:$0xff]
    %v246 = vld [vmem:[#allocation6 + $0x48] sm:$0xff]
    %v247 = vld [vmem:[#allocation6 + $0x50] sm:$0xff]
    %v248 = vld [vmem:[#allocation6 + $0x58] sm:$0xff]
    %v249 = vld [vmem:[#allocation6 + $0x60] sm:$0xff]
    %v250 = vld [vmem:[#allocation6 + $0x68] sm:$0xff]
    %v251 = vld [vmem:[#allocation6 + $0x70] sm:$0xff]
    %v252 = vld [vmem:[#allocation6 + $0x78] sm:$0xff]
    %v253 = vld [vmem:[%s4] sm:$0x1]
    %v255 = vlaneseq
    %v256 = vshrl.u32 %v255, 7
    %v257 = vsub.s32 0, %v256
    %v258 = vrot.slane %v253, %v257
    %v260 = vld [vmem:[#allocation2] sm:$0xff]
    %261 = vmatprep.subr.mxu0 0.0
    %262 = vmatpush1.msra.mxu0 %v237
    %263 = vmatprep.subr.mxu0 0.0
    %264 = vmatpush1.msra.mxu0 %v238
    %265 = vmatprep.subr.mxu0 0.0
    %266 = vmatpush1.msra.mxu0 %v239
    %267 = vmatprep.subr.mxu0 0.0
    %268 = vmatpush1.msra.mxu0 %v240
    %269 = vmatprep.subr.mxu0 0.0
    %270 = vmatpush1.msra.mxu0 %v241
    %271 = vmatprep.subr.mxu0 0.0
    %272 = vmatpush1.msra.mxu0 %v242
    %273 = vmatprep.subr.mxu0 0.0
    %274 = vmatpush1.msra.mxu0 %v243
    %275 = vmatprep.subr.mxu0 0.0
    %276 = vmatpush1.msra.mxu0 %v244
    %277 = vmatprep.subr.mxu0 0.0
    %278 = vmatpush1.msra.mxu0 %v245
    %279 = vmatprep.subr.mxu0 0.0
    %280 = vmatpush1.msra.mxu0 %v246
    %281 = vmatprep.subr.mxu0 0.0
    %282 = vmatpush1.msra.mxu0 %v247
    %283 = vmatprep.subr.mxu0 0.0
    %284 = vmatpush1.msra.mxu0 %v248
    %285 = vmatprep.subr.mxu0 0.0
    %286 = vmatpush1.msra.mxu0 %v249
    %287 = vmatprep.subr.mxu0 0.0
    %288 = vmatpush1.msra.mxu0 %v250
    %289 = vmatprep.subr.mxu0 0.0
    %290 = vmatpush1.msra.mxu0 %v251
    %291 = vmatprep.subr.mxu0 0.0
    %292 = vmatpush1.msra.mxu0 %v252
    %293 = vmatprep.subr.mxu0 0.0
    %294 = vmatpush1.msra.mxu0 0.0
    %295 = vmatprep.subr.mxu0 0.0
    %296 = vmatpush1.msra.mxu0 0.0
    %297 = vmatprep.subr.mxu0 0.0
    %298 = vmatpush1.msra.mxu0 0.0
    %299 = vmatprep.subr.mxu0 0.0
    %300 = vmatpush1.msra.mxu0 0.0
    %301 = vmatprep.subr.mxu0 0.0
    %302 = vmatpush1.msra.mxu0 0.0
    %303 = vmatprep.subr.mxu0 0.0
    %304 = vmatpush1.msra.mxu0 0.0
    %305 = vmatprep.subr.mxu0 0.0
    %306 = vmatpush1.msra.mxu0 0.0
    %307 = vmatprep.subr.mxu0 0.0
    %308 = vmatpush1.msra.mxu0 0.0
    %309 = vmatprep.subr.mxu0 0.0
    %310 = vmatpush1.msra.mxu0 0.0
    %311 = vmatprep.subr.mxu0 0.0
    %312 = vmatpush1.msra.mxu0 0.0
    %313 = vmatprep.subr.mxu0 0.0
    %314 = vmatpush1.msra.mxu0 0.0
    %315 = vmatprep.subr.mxu0 0.0
    %316 = vmatpush1.msra.mxu0 0.0
    %317 = vmatprep.subr.mxu0 0.0
    %318 = vmatpush1.msra.mxu0 0.0
    %319 = vmatprep.subr.mxu0 0.0
    %320 = vmatpush1.msra.mxu0 0.0
    %321 = vmatprep.subr.mxu0 0.0
    %322 = vmatpush1.msra.mxu0 0.0
    %323 = vmatprep.subr.mxu0 0.0
    %324 = vmatpush1.msra.mxu0 0.0
    %325 = vmatprep.mubr.f32.mxu0 0.0
    %326 = vmatmul.mubr.f32.gmra.mrb[0].mxu0 0.0
    %v327 = vpop.f32.mrb[0].mxu0
    %v328 = vadd.f32 %v258, %v327
    %v329 = vpop.f32.mrb[0].mxu0
    %330 = vdwg.mxu0
    %v331 = vadd.f32 %v260, %v328
    %v332 = vxor.u32 %v331, 2147483648
    %v333 = vmul.f32 %v332, 1.442695
    %v334 = vpow.pop %v333
    %v335 = vadd.f32 %v334, 1.0
    %v336 = vrcp.pop %v335
    %v337 = vmul.f32 1.0, %v336
    %338 = vrot.lane.b32.xlu0 %v337, 64
    %v339 = vpop.permute.xlu0 %338
    %v340 = vmul.f32 %v339, %v328
    %v341 = vadd.f32 %v260, %v340
    %v342 = vtanh.pop %v341
    %343 = vrot.lane.b32.xlu0 %v337, 96
    %v344 = vpop.permute.xlu0 %343
    %345 = vrot.lane.b32.xlu0 %v342, 64
    %v346 = vpop.permute.xlu0 %345
    %v347 = vsub.f32 1.0, %v344
    %v348 = vmul.f32 %v347, %v346
    %v349 = vmul.f32 %v344, 0.0
    %v350 = vadd.f32 %v348, %v349
    %vm351 = vcmp.gt.s32.totalorder %v236, 0
    %v352 = vsel %vm351, 1, 0
    %353 = vset.pattern.permute.xlu0 0
    %354 = vperm.xlu0 %353, %v352
    %v355 = vpop.permute.xlu0 %354
    %vm356 = vcmp.eq.s32.totalorder %v355, 1
    %v357 = vsel %vm356, %v350, 0.0
    %s358 = scalar_lea.vmem [#allocation2], 8
    %v359 = vld [vmem:[%s358] sm:$0xff]
    %360 = vmatprep.subr.mxu0 0.0
    %361 = vmatpush1.msra.mxu0 %v237
    %362 = vmatprep.subr.mxu0 0.0
    %363 = vmatpush1.msra.mxu0 %v238
    %364 = vmatprep.subr.mxu0 0.0
    %365 = vmatpush1.msra.mxu0 %v239
    %366 = vmatprep.subr.mxu0 0.0
    %367 = vmatpush1.msra.mxu0 %v240
    %368 = vmatprep.subr.mxu0 0.0
    %369 = vmatpush1.msra.mxu0 %v241
    %370 = vmatprep.subr.mxu0 0.0
    %371 = vmatpush1.msra.mxu0 %v242
    %372 = vmatprep.subr.mxu0 0.0
    %373 = vmatpush1.msra.mxu0 %v243
    %374 = vmatprep.subr.mxu0 0.0
    %375 = vmatpush1.msra.mxu0 %v244
    %376 = vmatprep.subr.mxu0 0.0
    %377 = vmatpush1.msra.mxu0 %v245
    %378 = vmatprep.subr.mxu0 0.0
    %379 = vmatpush1.msra.mxu0 %v246
    %380 = vmatprep.subr.mxu0 0.0
    %381 = vmatpush1.msra.mxu0 %v247
    %382 = vmatprep.subr.mxu0 0.0
    %383 = vmatpush1.msra.mxu0 %v248
    %384 = vmatprep.subr.mxu0 0.0
    %385 = vmatpush1.msra.mxu0 %v249
    %386 = vmatprep.subr.mxu0 0.0
    %387 = vmatpush1.msra.mxu0 %v250
    %388 = vmatprep.subr.mxu0 0.0
    %389 = vmatpush1.msra.mxu0 %v251
    %390 = vmatprep.subr.mxu0 0.0
    %391 = vmatpush1.msra.mxu0 %v252
    %392 = vmatprep.subr.mxu0 0.0
    %393 = vmatpush1.msra.mxu0 0.0
    %394 = vmatprep.subr.mxu0 0.0
    %395 = vmatpush1.msra.mxu0 0.0
    %396 = vmatprep.subr.mxu0 0.0
    %397 = vmatpush1.msra.mxu0 0.0
    %398 = vmatprep.subr.mxu0 0.0
    %399 = vmatpush1.msra.mxu0 0.0
    %400 = vmatprep.subr.mxu0 0.0
    %401 = vmatpush1.msra.mxu0 0.0
    %402 = vmatprep.subr.mxu0 0.0
    %403 = vmatpush1.msra.mxu0 0.0
    %404 = vmatprep.subr.mxu0 0.0
    %405 = vmatpush1.msra.mxu0 0.0
    %406 = vmatprep.subr.mxu0 0.0
    %407 = vmatpush1.msra.mxu0 0.0
    %408 = vmatprep.subr.mxu0 0.0
    %409 = vmatpush1.msra.mxu0 0.0
    %410 = vmatprep.subr.mxu0 0.0
    %411 = vmatpush1.msra.mxu0 0.0
    %412 = vmatprep.subr.mxu0 0.0
    %413 = vmatpush1.msra.mxu0 0.0
    %414 = vmatprep.subr.mxu0 0.0
    %415 = vmatpush1.msra.mxu0 0.0
    %416 = vmatprep.subr.mxu0 0.0
    %417 = vmatpush1.msra.mxu0 0.0
    %418 = vmatprep.subr.mxu0 0.0
    %419 = vmatpush1.msra.mxu0 0.0
    %420 = vmatprep.subr.mxu0 0.0
    %421 = vmatpush1.msra.mxu0 0.0
    %422 = vmatprep.subr.mxu0 0.0
    %423 = vmatpush1.msra.mxu0 0.0
    %424 = vmatprep.mubr.f32.mxu0 0.0
    %425 = vmatmul.mubr.f32.gmra.mrb[0].mxu0 %v357
    %v426 = vpop.f32.mrb[0].mxu0
    %v427 = vadd.f32 %v258, %v426
    %v428 = vpop.f32.mrb[0].mxu0
    %429 = vdwg.mxu0
    %v430 = vadd.f32 %v359, %v427
    %v431 = vxor.u32 %v430, 2147483648
    %v432 = vmul.f32 %v431, 1.442695
    %v433 = vpow.pop %v432
    %v434 = vadd.f32 %v433, 1.0
    %v435 = vrcp.pop %v434
    %v436 = vmul.f32 1.0, %v435
    %437 = vrot.lane.b32.xlu0 %v436, 64
    %v438 = vpop.permute.xlu0 %437
    %v439 = vmul.f32 %v438, %v427
    %v440 = vadd.f32 %v359, %v439
    %v441 = vtanh.pop %v440
    %442 = vrot.lane.b32.xlu0 %v436, 96
    %v443 = vpop.permute.xlu0 %442
    %444 = vrot.lane.b32.xlu0 %v441, 64
    %v445 = vpop.permute.xlu0 %444
    %v446 = vsub.f32 1.0, %v443
    %v447 = vmul.f32 %v446, %v445
    %v448 = vmul.f32 %v443, %v357
    %v449 = vadd.f32 %v447, %v448
    %vm450 = vcmp.gt.s32.totalorder %v236, 1
    %v451 = vsel %vm450, 1, 0
    %452 = vset.pattern.permute.xlu0 0
    %453 = vperm.xlu0 %452, %v451
    %v454 = vpop.permute.xlu0 %453
    %vm455 = vcmp.eq.s32.totalorder %v454, 1
    %v456 = vsel %vm455, %v449, %v357
    %s457 = scalar_lea.vmem [#allocation2], 16
    %v458 = vld [vmem:[%s457] sm:$0xff]
    %459 = vmatprep.subr.mxu0 0.0
    %460 = vmatpush1.msra.mxu0 %v237
    %461 = vmatprep.subr.mxu0 0.0
    %462 = vmatpush1.msra.mxu0 %v238
    %463 = vmatprep.subr.mxu0 0.0
    %464 = vmatpush1.msra.mxu0 %v239
    %465 = vmatprep.subr.mxu0 0.0
    %466 = vmatpush1.msra.mxu0 %v240
    %467 = vmatprep.subr.mxu0 0.0
    %468 = vmatpush1.msra.mxu0 %v241
    %469 = vmatprep.subr.mxu0 0.0
    %470 = vmatpush1.msra.mxu0 %v242
    %471 = vmatprep.subr.mxu0 0.0
    %472 = vmatpush1.msra.mxu0 %v243
    %473 = vmatprep.subr.mxu0 0.0
    %474 = vmatpush1.msra.mxu0 %v244
    %475 = vmatprep.subr.mxu0 0.0
    %476 = vmatpush1.msra.mxu0 %v245
    %477 = vmatprep.subr.mxu0 0.0
    %478 = vmatpush1.msra.mxu0 %v246
    %479 = vmatprep.subr.mxu0 0.0
    %480 = vmatpush1.msra.mxu0 %v247
    %481 = vmatprep.subr.mxu0 0.0
    %482 = vmatpush1.msra.mxu0 %v248
    %483 = vmatprep.subr.mxu0 0.0
    %484 = vmatpush1.msra.mxu0 %v249
    %485 = vmatprep.subr.mxu0 0.0
    %486 = vmatpush1.msra.mxu0 %v250
    %487 = vmatprep.subr.mxu0 0.0
    %488 = vmatpush1.msra.mxu0 %v251
    %489 = vmatprep.subr.mxu0 0.0
    %490 = vmatpush1.msra.mxu0 %v252
    %491 = vmatprep.subr.mxu0 0.0
    %492 = vmatpush1.msra.mxu0 0.0
    %493 = vmatprep.subr.mxu0 0.0
    %494 = vmatpush1.msra.mxu0 0.0
    %495 = vmatprep.subr.mxu0 0.0
    %496 = vmatpush1.msra.mxu0 0.0
    %497 = vmatprep.subr.mxu0 0.0
    %498 = vmatpush1.msra.mxu0 0.0
    %499 = vmatprep.subr.mxu0 0.0
    %500 = vmatpush1.msra.mxu0 0.0
    %501 = vmatprep.subr.mxu0 0.0
    %502 = vmatpush1.msra.mxu0 0.0
    %503 = vmatprep.subr.mxu0 0.0
    %504 = vmatpush1.msra.mxu0 0.0
    %505 = vmatprep.subr.mxu0 0.0
    %506 = vmatpush1.msra.mxu0 0.0
    %507 = vmatprep.subr.mxu0 0.0
    %508 = vmatpush1.msra.mxu0 0.0
    %509 = vmatprep.subr.mxu0 0.0
    %510 = vmatpush1.msra.mxu0 0.0
    %511 = vmatprep.subr.mxu0 0.0
    %512 = vmatpush1.msra.mxu0 0.0
    %513 = vmatprep.subr.mxu0 0.0
    %514 = vmatpush1.msra.mxu0 0.0
    %515 = vmatprep.subr.mxu0 0.0
    %516 = vmatpush1.msra.mxu0 0.0
    %517 = vmatprep.subr.mxu0 0.0
    %518 = vmatpush1.msra.mxu0 0.0
    %519 = vmatprep.subr.mxu0 0.0
    %520 = vmatpush1.msra.mxu0 0.0
    %521 = vmatprep.subr.mxu0 0.0
    %522 = vmatpush1.msra.mxu0 0.0
    %523 = vmatprep.mubr.f32.mxu0 0.0
    %524 = vmatmul.mubr.f32.gmra.mrb[0].mxu0 %v456
    %v525 = vpop.f32.mrb[0].mxu0
    %v526 = vadd.f32 %v258, %v525
    %v527 = vpop.f32.mrb[0].mxu0
    %528 = vdwg.mxu0
    %v529 = vadd.f32 %v458, %v526
    %v530 = vxor.u32 %v529, 2147483648
    %v531 = vmul.f32 %v530, 1.442695
    %v532 = vpow.pop %v531
    %v533 = vadd.f32 %v532, 1.0
    %v534 = vrcp.pop %v533
    %v535 = vmul.f32 1.0, %v534
    %536 = vrot.lane.b32.xlu0 %v535, 64
    %v537 = vpop.permute.xlu0 %536
    %v538 = vmul.f32 %v537, %v526
    %v539 = vadd.f32 %v458, %v538
    %v540 = vtanh.pop %v539
    %541 = vrot.lane.b32.xlu0 %v535, 96
    %v542 = vpop.permute.xlu0 %541
    %543 = vrot.lane.b32.xlu0 %v540, 64
    %v544 = vpop.permute.xlu0 %543
    %v545 = vsub.f32 1.0, %v542
    %v546 = vmul.f32 %v545, %v544
    %v547 = vmul.f32 %v542, %v456
    %v548 = vadd.f32 %v546, %v547
    %vm549 = vcmp.gt.s32.totalorder %v236, 2
    %v550 = vsel %vm549, 1, 0
    %551 = vset.pattern.permute.xlu0 0
    %552 = vperm.xlu0 %551, %v550
    %v553 = vpop.permute.xlu0 %552
    %vm554 = vcmp.eq.s32.totalorder %v553, 1
    %v555 = vsel %vm554, %v548, %v456
    %s556 = scalar_lea.vmem [#allocation2], 24
    %v557 = vld [vmem:[%s556] sm:$0xff]
    %558 = vmatprep.subr.mxu0 0.0
    %559 = vmatpush1.msra.mxu0 %v237
    %560 = vmatprep.subr.mxu0 0.0
    %561 = vmatpush1.msra.mxu0 %v238
    %562 = vmatprep.subr.mxu0 0.0
    %563 = vmatpush1.msra.mxu0 %v239
    %564 = vmatprep.subr.mxu0 0.0
    %565 = vmatpush1.msra.mxu0 %v240
    %566 = vmatprep.subr.mxu0 0.0
    %567 = vmatpush1.msra.mxu0 %v241
    %568 = vmatprep.subr.mxu0 0.0
    %569 = vmatpush1.msra.mxu0 %v242
    %570 = vmatprep.subr.mxu0 0.0
    %571 = vmatpush1.msra.mxu0 %v243
    %572 = vmatprep.subr.mxu0 0.0
    %573 = vmatpush1.msra.mxu0 %v244
    %574 = vmatprep.subr.mxu0 0.0
    %575 = vmatpush1.msra.mxu0 %v245
    %576 = vmatprep.subr.mxu0 0.0
    %577 = vmatpush1.msra.mxu0 %v246
    %578 = vmatprep.subr.mxu0 0.0
    %579 = vmatpush1.msra.mxu0 %v247
    %580 = vmatprep.subr.mxu0 0.0
    %581 = vmatpush1.msra.mxu0 %v248
    %582 = vmatprep.subr.mxu0 0.0
    %583 = vmatpush1.msra.mxu0 %v249
    %584 = vmatprep.subr.mxu0 0.0
    %585 = vmatpush1.msra.mxu0 %v250
    %586 = vmatprep.subr.mxu0 0.0
    %587 = vmatpush1.msra.mxu0 %v251
    %588 = vmatprep.subr.mxu0 0.0
    %589 = vmatpush1.msra.mxu0 %v252
    %590 = vmatprep.subr.mxu0 0.0
    %591 = vmatpush1.msra.mxu0 0.0
    %592 = vmatprep.subr.mxu0 0.0
    %593 = vmatpush1.msra.mxu0 0.0
    %594 = vmatprep.subr.mxu0 0.0
    %595 = vmatpush1.msra.mxu0 0.0
    %596 = vmatprep.subr.mxu0 0.0
    %597 = vmatpush1.msra.mxu0 0.0
    %598 = vmatprep.subr.mxu0 0.0
    %599 = vmatpush1.msra.mxu0 0.0
    %600 = vmatprep.subr.mxu0 0.0
    %601 = vmatpush1.msra.mxu0 0.0
    %602 = vmatprep.subr.mxu0 0.0
    %603 = vmatpush1.msra.mxu0 0.0
    %604 = vmatprep.subr.mxu0 0.0
    %605 = vmatpush1.msra.mxu0 0.0
    %606 = vmatprep.subr.mxu0 0.0
    %607 = vmatpush1.msra.mxu0 0.0
    %608 = vmatprep.subr.mxu0 0.0
    %609 = vmatpush1.msra.mxu0 0.0
    %610 = vmatprep.subr.mxu0 0.0
    %611 = vmatpush1.msra.mxu0 0.0
    %612 = vmatprep.subr.mxu0 0.0
    %613 = vmatpush1.msra.mxu0 0.0
    %614 = vmatprep.subr.mxu0 0.0
    %615 = vmatpush1.msra.mxu0 0.0
    %616 = vmatprep.subr.mxu0 0.0
    %617 = vmatpush1.msra.mxu0 0.0
    %618 = vmatprep.subr.mxu0 0.0
    %619 = vmatpush1.msra.mxu0 0.0
    %620 = vmatprep.subr.mxu0 0.0
    %621 = vmatpush1.msra.mxu0 0.0
    %622 = vmatprep.mubr.f32.mxu0 0.0
    %623 = vmatmul.mubr.f32.gmra.mrb[0].mxu0 %v555
    %v624 = vpop.f32.mrb[0].mxu0
    %v625 = vadd.f32 %v258, %v624
    %v626 = vpop.f32.mrb[0].mxu0
    %627 = vdwg.mxu0
    %v628 = vadd.f32 %v557, %v625
    %v629 = vxor.u32 %v628, 2147483648
    %v630 = vmul.f32 %v629, 1.442695
    %v631 = vpow.pop %v630
    %v632 = vadd.f32 %v631, 1.0
    %v633 = vrcp.pop %v632
    %v634 = vmul.f32 1.0, %v633
    %635 = vrot.lane.b32.xlu0 %v634, 64
    %v636 = vpop.permute.xlu0 %635
    %v637 = vmul.f32 %v636, %v625
    %v638 = vadd.f32 %v557, %v637
    %v639 = vtanh.pop %v638
    %640 = vrot.lane.b32.xlu0 %v634, 96
    %v641 = vpop.permute.xlu0 %640
    %642 = vrot.lane.b32.xlu0 %v639, 64
    %v643 = vpop.permute.xlu0 %642
    %v644 = vsub.f32 1.0, %v641
    %v645 = vmul.f32 %v644, %v643
    %v646 = vmul.f32 %v641, %v555
    %v647 = vadd.f32 %v645, %v646
    %vm648 = vcmp.gt.s32.totalorder %v236, 3
    %v649 = vsel %vm648, 1, 0
    %650 = vset.pattern.permute.xlu0 0
    %651 = vperm.xlu0 %650, %v649
    %v652 = vpop.permute.xlu0 %651
    %vm653 = vcmp.eq.s32.totalorder %v652, 1
    %v654 = vsel %vm653, %v647, %v555
    %s655 = scalar_lea.vmem [#allocation2], 32
    %v656 = vld [vmem:[%s655] sm:$0xff]
    %657 = vmatprep.subr.mxu0 0.0
    %658 = vmatpush1.msra.mxu0 %v237
    %659 = vmatprep.subr.mxu0 0.0
    %660 = vmatpush1.msra.mxu0 %v238
    %661 = vmatprep.subr.mxu0 0.0
    %662 = vmatpush1.msra.mxu0 %v239
    %663 = vmatprep.subr.mxu0 0.0
    %664 = vmatpush1.msra.mxu0 %v240
    %665 = vmatprep.subr.mxu0 0.0
    %666 = vmatpush1.msra.mxu0 %v241
    %667 = vmatprep.subr.mxu0 0.0
    %668 = vmatpush1.msra.mxu0 %v242
    %669 = vmatprep.subr.mxu0 0.0
    %670 = vmatpush1.msra.mxu0 %v243
    %671 = vmatprep.subr.mxu0 0.0
    %672 = vmatpush1.msra.mxu0 %v244
    %673 = vmatprep.subr.mxu0 0.0
    %674 = vmatpush1.msra.mxu0 %v245
    %675 = vmatprep.subr.mxu0 0.0
    %676 = vmatpush1.msra.mxu0 %v246
    %677 = vmatprep.subr.mxu0 0.0
    %678 = vmatpush1.msra.mxu0 %v247
    %679 = vmatprep.subr.mxu0 0.0
    %680 = vmatpush1.msra.mxu0 %v248
    %681 = vmatprep.subr.mxu0 0.0
    %682 = vmatpush1.msra.mxu0 %v249
    %683 = vmatprep.subr.mxu0 0.0
    %684 = vmatpush1.msra.mxu0 %v250
    %685 = vmatprep.subr.mxu0 0.0
    %686 = vmatpush1.msra.mxu0 %v251
    %687 = vmatprep.subr.mxu0 0.0
    %688 = vmatpush1.msra.mxu0 %v252
    %689 = vmatprep.subr.mxu0 0.0
    %690 = vmatpush1.msra.mxu0 0.0
    %691 = vmatprep.subr.mxu0 0.0
    %692 = vmatpush1.msra.mxu0 0.0
    %693 = vmatprep.subr.mxu0 0.0
    %694 = vmatpush1.msra.mxu0 0.0
    %695 = vmatprep.subr.mxu0 0.0
    %696 = vmatpush1.msra.mxu0 0.0
    %697 = vmatprep.subr.mxu0 0.0
    %698 = vmatpush1.msra.mxu0 0.0
    %699 = vmatprep.subr.mxu0 0.0
    %700 = vmatpush1.msra.mxu0 0.0
    %701 = vmatprep.subr.mxu0 0.0
    %702 = vmatpush1.msra.mxu0 0.0
    %703 = vmatprep.subr.mxu0 0.0
    %704 = vmatpush1.msra.mxu0 0.0
    %705 = vmatprep.subr.mxu0 0.0
    %706 = vmatpush1.msra.mxu0 0.0
    %707 = vmatprep.subr.mxu0 0.0
    %708 = vmatpush1.msra.mxu0 0.0
    %709 = vmatprep.subr.mxu0 0.0
    %710 = vmatpush1.msra.mxu0 0.0
    %711 = vmatprep.subr.mxu0 0.0
    %712 = vmatpush1.msra.mxu0 0.0
    %713 = vmatprep.subr.mxu0 0.0
    %714 = vmatpush1.msra.mxu0 0.0
    %715 = vmatprep.subr.mxu0 0.0
    %716 = vmatpush1.msra.mxu0 0.0
    %717 = vmatprep.subr.mxu0 0.0
    %718 = vmatpush1.msra.mxu0 0.0
    %719 = vmatprep.subr.mxu0 0.0
    %720 = vmatpush1.msra.mxu0 0.0
    %721 = vmatprep.mubr.f32.mxu0 0.0
    %722 = vmatmul.mubr.f32.gmra.mrb[0].mxu0 %v654
    %v723 = vpop.f32.mrb[0].mxu0
    %v724 = vadd.f32 %v258, %v723
    %v725 = vpop.f32.mrb[0].mxu0
    %726 = vdwg.mxu0
    %v727 = vadd.f32 %v656, %v724
    %v728 = vxor.u32 %v727, 2147483648
    %v729 = vmul.f32 %v728, 1.442695
    %v730 = vpow.pop %v729
    %v731 = vadd.f32 %v730, 1.0
    %v732 = vrcp.pop %v731
    %v733 = vmul.f32 1.0, %v732
    %734 = vrot.lane.b32.xlu0 %v733, 64
    %v735 = vpop.permute.xlu0 %734
    %v736 = vmul.f32 %v735, %v724
    %v737 = vadd.f32 %v656, %v736
    %v738 = vtanh.pop %v737
    %739 = vrot.lane.b32.xlu0 %v733, 96
    %v740 = vpop.permute.xlu0 %739
    %741 = vrot.lane.b32.xlu0 %v738, 64
    %v742 = vpop.permute.xlu0 %741
    %v743 = vsub.f32 1.0, %v740
    %v744 = vmul.f32 %v743, %v742
    %v745 = vmul.f32 %v740, %v654
    %v746 = vadd.f32 %v744, %v745
    %vm747 = vcmp.gt.s32.totalorder %v236, 4
    %v748 = vsel %vm747, 1, 0
    %749 = vset.pattern.permute.xlu0 0
    %750 = vperm.xlu0 %749, %v748
    %v751 = vpop.permute.xlu0 %750
    %vm752 = vcmp.eq.s32.totalorder %v751, 1
    %v753 = vsel %vm752, %v746, %v654
    %s754 = scalar_lea.vmem [#allocation2], 40
    %v755 = vld [vmem:[%s754] sm:$0xff]
    %756 = vmatprep.subr.mxu0 0.0
    %757 = vmatpush1.msra.mxu0 %v237
    %758 = vmatprep.subr.mxu0 0.0
    %759 = vmatpush1.msra.mxu0 %v238
    %760 = vmatprep.subr.mxu0 0.0
    %761 = vmatpush1.msra.mxu0 %v239
    %762 = vmatprep.subr.mxu0 0.0
    %763 = vmatpush1.msra.mxu0 %v240
    %764 = vmatprep.subr.mxu0 0.0
    %765 = vmatpush1.msra.mxu0 %v241
    %766 = vmatprep.subr.mxu0 0.0
    %767 = vmatpush1.msra.mxu0 %v242
    %768 = vmatprep.subr.mxu0 0.0
    %769 = vmatpush1.msra.mxu0 %v243
    %770 = vmatprep.subr.mxu0 0.0
    %771 = vmatpush1.msra.mxu0 %v244
    %772 = vmatprep.subr.mxu0 0.0
    %773 = vmatpush1.msra.mxu0 %v245
    %774 = vmatprep.subr.mxu0 0.0
    %775 = vmatpush1.msra.mxu0 %v246
    %776 = vmatprep.subr.mxu0 0.0
    %777 = vmatpush1.msra.mxu0 %v247
    %778 = vmatprep.subr.mxu0 0.0
    %779 = vmatpush1.msra.mxu0 %v248
    %780 = vmatprep.subr.mxu0 0.0
    %781 = vmatpush1.msra.mxu0 %v249
    %782 = vmatprep.subr.mxu0 0.0
    %783 = vmatpush1.msra.mxu0 %v250
    %784 = vmatprep.subr.mxu0 0.0
    %785 = vmatpush1.msra.mxu0 %v251
    %786 = vmatprep.subr.mxu0 0.0
    %787 = vmatpush1.msra.mxu0 %v252
    %788 = vmatprep.subr.mxu0 0.0
    %789 = vmatpush1.msra.mxu0 0.0
    %790 = vmatprep.subr.mxu0 0.0
    %791 = vmatpush1.msra.mxu0 0.0
    %792 = vmatprep.subr.mxu0 0.0
    %793 = vmatpush1.msra.mxu0 0.0
    %794 = vmatprep.subr.mxu0 0.0
    %795 = vmatpush1.msra.mxu0 0.0
    %796 = vmatprep.subr.mxu0 0.0
    %797 = vmatpush1.msra.mxu0 0.0
    %798 = vmatprep.subr.mxu0 0.0
    %799 = vmatpush1.msra.mxu0 0.0
    %800 = vmatprep.subr.mxu0 0.0
    %801 = vmatpush1.msra.mxu0 0.0
    %802 = vmatprep.subr.mxu0 0.0
    %803 = vmatpush1.msra.mxu0 0.0
    %804 = vmatprep.subr.mxu0 0.0
    %805 = vmatpush1.msra.mxu0 0.0
    %806 = vmatprep.subr.mxu0 0.0
    %807 = vmatpush1.msra.mxu0 0.0
    %808 = vmatprep.subr.mxu0 0.0
    %809 = vmatpush1.msra.mxu0 0.0
    %810 = vmatprep.subr.mxu0 0.0
    %811 = vmatpush1.msra.mxu0 0.0
    %812 = vmatprep.subr.mxu0 0.0
    %813 = vmatpush1.msra.mxu0 0.0
    %814 = vmatprep.subr.mxu0 0.0
    %815 = vmatpush1.msra.mxu0 0.0
    %816 = vmatprep.subr.mxu0 0.0
    %817 = vmatpush1.msra.mxu0 0.0
    %818 = vmatprep.subr.mxu0 0.0
    %819 = vmatpush1.msra.mxu0 0.0
    %820 = vmatprep.mubr.f32.mxu0 0.0
    %821 = vmatmul.mubr.f32.gmra.mrb[0].mxu0 %v753
    %v822 = vpop.f32.mrb[0].mxu0
    %v823 = vadd.f32 %v258, %v822
    %v824 = vpop.f32.mrb[0].mxu0
    %825 = vdwg.mxu0
    %v826 = vadd.f32 %v755, %v823
    %v827 = vxor.u32 %v826, 2147483648
    %v828 = vmul.f32 %v827, 1.442695
    %v829 = vpow.pop %v828
    %v830 = vadd.f32 %v829, 1.0
    %v831 = vrcp.pop %v830
    %v832 = vmul.f32 1.0, %v831
    %833 = vrot.lane.b32.xlu0 %v832, 64
    %v834 = vpop.permute.xlu0 %833
    %v835 = vmul.f32 %v834, %v823
    %v836 = vadd.f32 %v755, %v835
    %v837 = vtanh.pop %v836
    %838 = vrot.lane.b32.xlu0 %v832, 96
    %v839 = vpop.permute.xlu0 %838
    %840 = vrot.lane.b32.xlu0 %v837, 64
    %v841 = vpop.permute.xlu0 %840
    %v842 = vsub.f32 1.0, %v839
    %v843 = vmul.f32 %v842, %v841
    %v844 = vmul.f32 %v839, %v753
    %v845 = vadd.f32 %v843, %v844
    %vm846 = vcmp.gt.s32.totalorder %v236, 5
    %v847 = vsel %vm846, 1, 0
    %848 = vset.pattern.permute.xlu0 0
    %849 = vperm.xlu0 %848, %v847
    %v850 = vpop.permute.xlu0 %849
    %vm851 = vcmp.eq.s32.totalorder %v850, 1
    %v852 = vsel %vm851, %v845, %v753
    %s853 = scalar_lea.vmem [#allocation2], 48
    %v854 = vld [vmem:[%s853] sm:$0xff]
    %855 = vmatprep.subr.mxu0 0.0
    %856 = vmatpush1.msra.mxu0 %v237
    %857 = vmatprep.subr.mxu0 0.0
    %858 = vmatpush1.msra.mxu0 %v238
    %859 = vmatprep.subr.mxu0 0.0
    %860 = vmatpush1.msra.mxu0 %v239
    %861 = vmatprep.subr.mxu0 0.0
    %862 = vmatpush1.msra.mxu0 %v240
    %863 = vmatprep.subr.mxu0 0.0
    %864 = vmatpush1.msra.mxu0 %v241
    %865 = vmatprep.subr.mxu0 0.0
    %866 = vmatpush1.msra.mxu0 %v242
    %867 = vmatprep.subr.mxu0 0.0
    %868 = vmatpush1.msra.mxu0 %v243
    %869 = vmatprep.subr.mxu0 0.0
    %870 = vmatpush1.msra.mxu0 %v244
    %871 = vmatprep.subr.mxu0 0.0
    %872 = vmatpush1.msra.mxu0 %v245
    %873 = vmatprep.subr.mxu0 0.0
    %874 = vmatpush1.msra.mxu0 %v246
    %875 = vmatprep.subr.mxu0 0.0
    %876 = vmatpush1.msra.mxu0 %v247
    %877 = vmatprep.subr.mxu0 0.0
    %878 = vmatpush1.msra.mxu0 %v248
    %879 = vmatprep.subr.mxu0 0.0
    %880 = vmatpush1.msra.mxu0 %v249
    %881 = vmatprep.subr.mxu0 0.0
    %882 = vmatpush1.msra.mxu0 %v250
    %883 = vmatprep.subr.mxu0 0.0
    %884 = vmatpush1.msra.mxu0 %v251
    %885 = vmatprep.subr.mxu0 0.0
    %886 = vmatpush1.msra.mxu0 %v252
    %887 = vmatprep.subr.mxu0 0.0
    %888 = vmatpush1.msra.mxu0 0.0
    %889 = vmatprep.subr.mxu0 0.0
    %890 = vmatpush1.msra.mxu0 0.0
    %891 = vmatprep.subr.mxu0 0.0
    %892 = vmatpush1.msra.mxu0 0.0
    %893 = vmatprep.subr.mxu0 0.0
    %894 = vmatpush1.msra.mxu0 0.0
    %895 = vmatprep.subr.mxu0 0.0
    %896 = vmatpush1.msra.mxu0 0.0
    %897 = vmatprep.subr.mxu0 0.0
    %898 = vmatpush1.msra.mxu0 0.0
    %899 = vmatprep.subr.mxu0 0.0
    %900 = vmatpush1.msra.mxu0 0.0
    %901 = vmatprep.subr.mxu0 0.0
    %902 = vmatpush1.msra.mxu0 0.0
    %903 = vmatprep.subr.mxu0 0.0
    %904 = vmatpush1.msra.mxu0 0.0
    %905 = vmatprep.subr.mxu0 0.0
    %906 = vmatpush1.msra.mxu0 0.0
    %907 = vmatprep.subr.mxu0 0.0
    %908 = vmatpush1.msra.mxu0 0.0
    %909 = vmatprep.subr.mxu0 0.0
    %910 = vmatpush1.msra.mxu0 0.0
    %911 = vmatprep.subr.mxu0 0.0
    %912 = vmatpush1.msra.mxu0 0.0
    %913 = vmatprep.subr.mxu0 0.0
    %914 = vmatpush1.msra.mxu0 0.0
    %915 = vmatprep.subr.mxu0 0.0
    %916 = vmatpush1.msra.mxu0 0.0
    %917 = vmatprep.subr.mxu0 0.0
    %918 = vmatpush1.msra.mxu0 0.0
    %919 = vmatprep.mubr.f32.mxu0 0.0
    %920 = vmatmul.mubr.f32.gmra.mrb[0].mxu0 %v852
    %v921 = vpop.f32.mrb[0].mxu0
    %v922 = vadd.f32 %v258, %v921
    %v923 = vpop.f32.mrb[0].mxu0
    %924 = vdwg.mxu0
    %v925 = vadd.f32 %v854, %v922
    %v926 = vxor.u32 %v925, 2147483648
    %v927 = vmul.f32 %v926, 1.442695
    %v928 = vpow.pop %v927
    %v929 = vadd.f32 %v928, 1.0
    %v930 = vrcp.pop %v929
    %v931 = vmul.f32 1.0, %v930
    %932 = vrot.lane.b32.xlu0 %v931, 64
    %v933 = vpop.permute.xlu0 %932
    %v934 = vmul.f32 %v933, %v922
    %v935 = vadd.f32 %v854, %v934
    %v936 = vtanh.pop %v935
    %937 = vrot.lane.b32.xlu0 %v931, 96
    %v938 = vpop.permute.xlu0 %937
    %939 = vrot.lane.b32.xlu0 %v936, 64
    %v940 = vpop.permute.xlu0 %939
    %v941 = vsub.f32 1.0, %v938
    %v942 = vmul.f32 %v941, %v940
    %v943 = vmul.f32 %v938, %v852
    %v944 = vadd.f32 %v942, %v943
    %vm945 = vcmp.gt.s32.totalorder %v236, 6
    %v946 = vsel %vm945, 1, 0
    %947 = vset.pattern.permute.xlu0 0
    %948 = vperm.xlu0 %947, %v946
    %v949 = vpop.permute.xlu0 %948
    %vm950 = vcmp.eq.s32.totalorder %v949, 1
    %v951 = vsel %vm950, %v944, %v852
    %s952 = scalar_lea.vmem [#allocation2], 56
    %v953 = vld [vmem:[%s952] sm:$0xff]
    %954 = vmatprep.subr.mxu0 0.0
    %955 = vmatpush1.msra.mxu0 %v237
    %956 = vmatprep.subr.mxu0 0.0
    %957 = vmatpush1.msra.mxu0 %v238
    %958 = vmatprep.subr.mxu0 0.0
    %959 = vmatpush1.msra.mxu0 %v239
    %960 = vmatprep.subr.mxu0 0.0
    %961 = vmatpush1.msra.mxu0 %v240
    %962 = vmatprep.subr.mxu0 0.0
    %963 = vmatpush1.msra.mxu0 %v241
    %964 = vmatprep.subr.mxu0 0.0
    %965 = vmatpush1.msra.mxu0 %v242
    %966 = vmatprep.subr.mxu0 0.0
    %967 = vmatpush1.msra.mxu0 %v243
    %968 = vmatprep.subr.mxu0 0.0
    %969 = vmatpush1.msra.mxu0 %v244
    %970 = vmatprep.subr.mxu0 0.0
    %971 = vmatpush1.msra.mxu0 %v245
    %972 = vmatprep.subr.mxu0 0.0
    %973 = vmatpush1.msra.mxu0 %v246
    %974 = vmatprep.subr.mxu0 0.0
    %975 = vmatpush1.msra.mxu0 %v247
    %976 = vmatprep.subr.mxu0 0.0
    %977 = vmatpush1.msra.mxu0 %v248
    %978 = vmatprep.subr.mxu0 0.0
    %979 = vmatpush1.msra.mxu0 %v249
    %980 = vmatprep.subr.mxu0 0.0
    %981 = vmatpush1.msra.mxu0 %v250
    %982 = vmatprep.subr.mxu0 0.0
    %983 = vmatpush1.msra.mxu0 %v251
    %984 = vmatprep.subr.mxu0 0.0
    %985 = vmatpush1.msra.mxu0 %v252
    %986 = vmatprep.subr.mxu0 0.0
    %987 = vmatpush1.msra.mxu0 0.0
    %988 = vmatprep.subr.mxu0 0.0
    %989 = vmatpush1.msra.mxu0 0.0
    %990 = vmatprep.subr.mxu0 0.0
    %991 = vmatpush1.msra.mxu0 0.0
    %992 = vmatprep.subr.mxu0 0.0
    %993 = vmatpush1.msra.mxu0 0.0
    %994 = vmatprep.subr.mxu0 0.0
    %995 = vmatpush1.msra.mxu0 0.0
    %996 = vmatprep.subr.mxu0 0.0
    %997 = vmatpush1.msra.mxu0 0.0
    %998 = vmatprep.subr.mxu0 0.0
    %999 = vmatpush1.msra.mxu0 0.0
    %1000 = vmatprep.subr.mxu0 0.0
    %1001 = vmatpush1.msra.mxu0 0.0
    %1002 = vmatprep.subr.mxu0 0.0
    %1003 = vmatpush1.msra.mxu0 0.0
    %1004 = vmatprep.subr.mxu0 0.0
    %1005 = vmatpush1.msra.mxu0 0.0
    %1006 = vmatprep.subr.mxu0 0.0
    %1007 = vmatpush1.msra.mxu0 0.0
    %1008 = vmatprep.subr.mxu0 0.0
    %1009 = vmatpush1.msra.mxu0 0.0
    %1010 = vmatprep.subr.mxu0 0.0
    %1011 = vmatpush1.msra.mxu0 0.0
    %1012 = vmatprep.subr.mxu0 0.0
    %1013 = vmatpush1.msra.mxu0 0.0
    %1014 = vmatprep.subr.mxu0 0.0
    %1015 = vmatpush1.msra.mxu0 0.0
    %1016 = vmatprep.subr.mxu0 0.0
    %1017 = vmatpush1.msra.mxu0 0.0
    %1018 = vmatprep.mubr.f32.mxu0 0.0
    %1019 = vmatmul.mubr.f32.gmra.mrb[0].mxu0 %v951
    %v1020 = vpop.f32.mrb[0].mxu0
    %v1021 = vadd.f32 %v258, %v1020
    %v1022 = vpop.f32.mrb[0].mxu0
    %1023 = vdwg.mxu0
    %v1024 = vadd.f32 %v953, %v1021
    %v1025 = vxor.u32 %v1024, 2147483648
    %v1026 = vmul.f32 %v1025, 1.442695
    %v1027 = vpow.pop %v1026
    %v1028 = vadd.f32 %v1027, 1.0
    %v1029 = vrcp.pop %v1028
    %v1030 = vmul.f32 1.0, %v1029
    %1031 = vrot.lane.b32.xlu0 %v1030, 64
    %v1032 = vpop.permute.xlu0 %1031
    %v1033 = vmul.f32 %v1032, %v1021
    %v1034 = vadd.f32 %v953, %v1033
    %v1035 = vtanh.pop %v1034
    %1036 = vrot.lane.b32.xlu0 %v1030, 96
    %v1037 = vpop.permute.xlu0 %1036
    %1038 = vrot.lane.b32.xlu0 %v1035, 64
    %v1039 = vpop.permute.xlu0 %1038
    %v1040 = vsub.f32 1.0, %v1037
    %v1041 = vmul.f32 %v1040, %v1039
    %v1042 = vmul.f32 %v1037, %v951
    %v1043 = vadd.f32 %v1041, %v1042
    %vm1044 = vcmp.gt.s32.totalorder %v236, 7
    %v1045 = vsel %vm1044, 1, 0
    %1046 = vset.pattern.permute.xlu0 0
    %1047 = vperm.xlu0 %1046, %v1045
    %v1048 = vpop.permute.xlu0 %1047
    %vm1049 = vcmp.eq.s32.totalorder %v1048, 1
    %v1050 = vsel %vm1049, %v1043, %v951
    %1051 = vst [vmem:[#allocation8] sm:$0xff] %v1050
    // Predicated region
    $region30: #{tpu_custom_call.1} parent=1 // pred_check
      _
    $region31: #{tpu_custom_call.1} parent=1 // pred_check_branch
      %1053 = sbr.rel (0) target = $region33
    $region32: #{tpu_custom_call.1} parent=1 // pred_region
      %s1055 = ssub.s32 128, 128
      %1056 = vsyncadd [#allocation5], %s1055
      %s1058 = sshll.u32 [#allocation8], 4
      %s1059 = int_to_ptr.vmem [resolvable:$true] %s1058
      %1061 = dma.vmem_to_hbm [thread:$0]  %s1059, 128, %s5, [#allocation5]
    $region33: #{tpu_custom_call.1} parent=1 // pred_fallthru
      _
    // Predicated region
    $region34: #{tpu_custom_call.1} parent=1 // pred_check
      _
    $region35: #{tpu_custom_call.1} parent=1 // pred_check_branch
      %1063 = sbr.rel (0) target = $region37
    $region36: #{tpu_custom_call.1} parent=1 // pred_region
      %1064 = dma.done [#allocation5], 128
    $region37: #{tpu_custom_call.1} parent=1 // pred_fallthru
      _
    %1065 = vsyncpa [#allocation4], 1
    %1066 = vsyncpa [#allocation7], 1
    %1067 = vsyncpa [#allocation5], 1

// kernel: tpu_custom_call.1
$region0: #{tpu_custom_call.1}
  #allocation0 [shape = 'u32[]', space=smem, size = 0x4, offset = 0x4, fixed_abs, tag = 'smem constant byte address 0x4 - core index']
  #allocation1 [shape = 'u32[144,128]{1,0:T(1,128)}', space=vmem, size = 0x12000, scoped, tag = 'internal scratch']
  #allocation2 [shape = 'f32[64,128]{1,0:T(8,128)}', space=vmem, size = 0x8000, scoped, tag = 'scratch operand']
  %s0 = inlined_call_operand.vmem [shape: s32[64,1], index: 0, kind: input, shape index: {}]
  %s1 = inlined_call_operand.vmem [shape: s32[8,1], index: 1, kind: input, shape index: {}]
  %s2 = inlined_call_operand.hbm [shape: f32[128,128], index: 2, kind: input, shape index: {}]
  %s3 = inlined_call_operand.hbm [shape: f32[128,128], index: 3, kind: input, shape index: {}]
  %s4 = inlined_call_operand.vmem [shape: f32[1,128], index: 4, kind: input, shape index: {}]
  %s5 = inlined_call_operand.hbm [shape: f32[8,128], index: 5, kind: output, shape index: {}]
  %s6 = sld [smem:[#allocation0]]
  $region38: #{tpu_custom_call.1} parent=0
    _
  %s8 = ssub.s32 1, %s6
  %s9 = scalar_select 0, %s8, %s6
  $region1: #{tpu_custom_call.1} parent=0
    #allocation3 [shape = 'u8[65536]{0}', space=vmem, size = 0x10000, scoped, tag = 'input window, operand 2, single buffered']
    #allocation4 [shape = 's32[1]{0}', space=sflag, size = 0x4, scoped, tag = 'scoped memory for tpu_custom_call.1']
    #allocation5 [shape = 's32[1]{0}', space=sflag, size = 0x4, scoped, tag = 'scoped memory for tpu_custom_call.1']
    #allocation6 [shape = 'u8[65536]{0}', space=vmem, size = 0x10000, scoped, tag = 'input window, operand 3, single buffered']
    #allocation7 [shape = 's32[1]{0}', space=sflag, size = 0x4, scoped, tag = 'scoped memory for tpu_custom_call.1']
    #allocation8 [shape = 'u8[4096]{0}', space=vmem, size = 0x1000, scoped, tag = 'output window, operand 0, single buffered']
    %10 = vsyncpa [#allocation4], 0
    %11 = vsyncpa [#allocation7], 0
    %12 = vsyncpa [#allocation5], 0
    // Predicated region
    $region2: #{tpu_custom_call.1} parent=1 // pred_check
      _
    $region3: #{tpu_custom_call.1} parent=1 // pred_check_branch
      %14 = sbr.rel (0) target = $region5
    $region4: #{tpu_custom_call.1} parent=1 // pred_region
      _
    $region5: #{tpu_custom_call.1} parent=1 // pred_fallthru
      _
    // Predicated region
    $region6: #{tpu_custom_call.1} parent=1 // pred_check
      _
    $region7: #{tpu_custom_call.1} parent=1 // pred_check_branch
      %16 = sbr.rel (0) target = $region9
    $region8: #{tpu_custom_call.1} parent=1 // pred_region
      _
    $region9: #{tpu_custom_call.1} parent=1 // pred_fallthru
      _
    // Predicated region
    $region10: #{tpu_custom_call.1} parent=1 // pred_check
      _
    $region11: #{tpu_custom_call.1} parent=1 // pred_check_branch
      %18 = sbr.rel (0) target = $region13
    $region12: #{tpu_custom_call.1} parent=1 // pred_region
      %s20 = ssub.s32 2048, 2048
      %21 = vsyncadd [#allocation4], %s20
      %s22 = sshll.u32 [#allocation3], 4
      %s23 = int_to_ptr.vmem [resolvable:$true] %s22
      %28 = dma.hbm_to_vmem [thread:$0]  %s2, 2048, %s23, [#allocation4], 128, 128, 8
    $region13: #{tpu_custom_call.1} parent=1 // pred_fallthru
      _
    // Predicated region
    $region14: #{tpu_custom_call.1} parent=1 // pred_check
      _
    $region15: #{tpu_custom_call.1} parent=1 // pred_check_branch
      %30 = sbr.rel (0) target = $region17
    $region16: #{tpu_custom_call.1} parent=1 // pred_region
      %s32 = ssub.s32 2048, 2048
      %33 = vsyncadd [#allocation7], %s32
      %s34 = sshll.u32 [#allocation6], 4
      %s35 = int_to_ptr.vmem [resolvable:$true] %s34
      %40 = dma.hbm_to_vmem [thread:$0]  %s3, 2048, %s35, [#allocation7], 128, 128, 8
    $region17: #{tpu_custom_call.1} parent=1 // pred_fallthru
      _
    // Predicated region
    $region18: #{tpu_custom_call.1} parent=1 // pred_check
      _
    $region19: #{tpu_custom_call.1} parent=1 // pred_check_branch
      %42 = sbr.rel (0) target = $region21
    $region20: #{tpu_custom_call.1} parent=1 // pred_region
      _
    $region21: #{tpu_custom_call.1} parent=1 // pred_fallthru
      _
    // Predicated region
    $region22: #{tpu_custom_call.1} parent=1 // pred_check
      _
    $region23: #{tpu_custom_call.1} parent=1 // pred_check_branch
      %44 = sbr.rel (0) target = $region25
    $region24: #{tpu_custom_call.1} parent=1 // pred_region
      %45 = dma.done [#allocation4], 2048
    $region25: #{tpu_custom_call.1} parent=1 // pred_fallthru
      _
    // Predicated region
    $region26: #{tpu_custom_call.1} parent=1 // pred_check
      _
    $region27: #{tpu_custom_call.1} parent=1 // pred_check_branch
      %47 = sbr.rel (0) target = $region29
    $region28: #{tpu_custom_call.1} parent=1 // pred_region
      %48 = dma.done [#allocation7], 2048
    $region29: #{tpu_custom_call.1} parent=1 // pred_fallthru
      _
    %v49 = vld [vmem:[%s0] sm:$0xff]
    %v50 = vld [vmem:[%s0 + $0x8] sm:$0xff]
    %v51 = vld [vmem:[%s0 + $0x10] sm:$0xff]
    %v52 = vld [vmem:[%s0 + $0x18] sm:$0xff]
    %v53 = vld [vmem:[%s0 + $0x20] sm:$0xff]
    %v54 = vld [vmem:[%s0 + $0x28] sm:$0xff]
    %v55 = vld [vmem:[%s0 + $0x30] sm:$0xff]
    %v56 = vld [vmem:[%s0 + $0x38] sm:$0xff]
    %v57 = vlaneseq
    %v58 = vand.u32 %v57, 127
    %59 = vset.pattern.permute.xlu0 0
    %60 = vperm.xlu0 %59, %v49
    %v61 = vpop.permute.xlu0 %60
    %62 = vset.pattern.permute.xlu0 0
    %63 = vperm.xlu0 %62, %v50
    %v64 = vpop.permute.xlu0 %63
    %65 = vset.pattern.permute.xlu0 0
    %66 = vperm.xlu0 %65, %v51
    %v67 = vpop.permute.xlu0 %66
    %68 = vset.pattern.permute.xlu0 0
    %69 = vperm.xlu0 %68, %v52
    %v70 = vpop.permute.xlu0 %69
    %71 = vset.pattern.permute.xlu0 0
    %72 = vperm.xlu0 %71, %v53
    %v73 = vpop.permute.xlu0 %72
    %74 = vset.pattern.permute.xlu0 0
    %75 = vperm.xlu0 %74, %v54
    %v76 = vpop.permute.xlu0 %75
    %77 = vset.pattern.permute.xlu0 0
    %78 = vperm.xlu0 %77, %v55
    %v79 = vpop.permute.xlu0 %78
    %80 = vset.pattern.permute.xlu0 0
    %81 = vperm.xlu0 %80, %v56
    %v82 = vpop.permute.xlu0 %81
    %vm83 = vcmp.eq.s32.totalorder %v58, %v61
    %vm84 = vcmp.eq.s32.totalorder %v58, %v64
    %vm85 = vcmp.eq.s32.totalorder %v58, %v67
    %vm86 = vcmp.eq.s32.totalorder %v58, %v70
    %vm87 = vcmp.eq.s32.totalorder %v58, %v73
    %vm88 = vcmp.eq.s32.totalorder %v58, %v76
    %vm89 = vcmp.eq.s32.totalorder %v58, %v79
    %vm90 = vcmp.eq.s32.totalorder %v58, %v82
    %v91 = vsel %vm83, 1, 0
    %v92 = vsel %vm84, 1, 0
    %v93 = vsel %vm85, 1, 0
    %v94 = vsel %vm86, 1, 0
    %v95 = vsel %vm87, 1, 0
    %v96 = vsel %vm88, 1, 0
    %v97 = vsel %vm89, 1, 0
    %v98 = vsel %vm90, 1, 0
    %v99 = vcvt.s32.f32 %v91
    %v100 = vcvt.s32.f32 %v92
    %v101 = vcvt.s32.f32 %v93
    %v102 = vcvt.s32.f32 %v94
    %v103 = vcvt.s32.f32 %v95
    %v104 = vcvt.s32.f32 %v96
    %v105 = vcvt.s32.f32 %v97
    %v106 = vcvt.s32.f32 %v98
    %v107 = vld [vmem:[#allocation3] sm:$0xff]
    %v108 = vld [vmem:[#allocation3 + $0x8] sm:$0xff]
    %v109 = vld [vmem:[#allocation3 + $0x10] sm:$0xff]
    %v110 = vld [vmem:[#allocation3 + $0x18] sm:$0xff]
    %v111 = vld [vmem:[#allocation3 + $0x20] sm:$0xff]
    %v112 = vld [vmem:[#allocation3 + $0x28] sm:$0xff]
    %v113 = vld [vmem:[#allocation3 + $0x30] sm:$0xff]
    %v114 = vld [vmem:[#allocation3 + $0x38] sm:$0xff]
    %v115 = vld [vmem:[#allocation3 + $0x40] sm:$0xff]
    %v116 = vld [vmem:[#allocation3 + $0x48] sm:$0xff]
    %v117 = vld [vmem:[#allocation3 + $0x50] sm:$0xff]
    %v118 = vld [vmem:[#allocation3 + $0x58] sm:$0xff]
    %v119 = vld [vmem:[#allocation3 + $0x60] sm:$0xff]
    %v120 = vld [vmem:[#allocation3 + $0x68] sm:$0xff]
    %v121 = vld [vmem:[#allocation3 + $0x70] sm:$0xff]
    %v122 = vld [vmem:[#allocation3 + $0x78] sm:$0xff]
    %123 = vmatprep.subr.mxu0 0.0
    %124 = vmatpush1.msra.mxu0 %v107
    %125 = vmatprep.subr.mxu0 0.0
    %126 = vmatpush1.msra.mxu0 %v108
    %127 = vmatprep.subr.mxu0 0.0
    %128 = vmatpush1.msra.mxu0 %v109
    %129 = vmatprep.subr.mxu0 0.0
    %130 = vmatpush1.msra.mxu0 %v110
    %131 = vmatprep.subr.mxu0 0.0
    %132 = vmatpush1.msra.mxu0 %v111
    %133 = vmatprep.subr.mxu0 0.0
    %134 = vmatpush1.msra.mxu0 %v112
    %135 = vmatprep.subr.mxu0 0.0
    %136 = vmatpush1.msra.mxu0 %v113
    %137 = vmatprep.subr.mxu0 0.0
    %138 = vmatpush1.msra.mxu0 %v114
    %139 = vmatprep.subr.mxu0 0.0
    %140 = vmatpush1.msra.mxu0 %v115
    %141 = vmatprep.subr.mxu0 0.0
    %142 = vmatpush1.msra.mxu0 %v116
    %143 = vmatprep.subr.mxu0 0.0
    %144 = vmatpush1.msra.mxu0 %v117
    %145 = vmatprep.subr.mxu0 0.0
    %146 = vmatpush1.msra.mxu0 %v118
    %147 = vmatprep.subr.mxu0 0.0
    %148 = vmatpush1.msra.mxu0 %v119
    %149 = vmatprep.subr.mxu0 0.0
    %150 = vmatpush1.msra.mxu0 %v120
    %151 = vmatprep.subr.mxu0 0.0
    %152 = vmatpush1.msra.mxu0 %v121
    %153 = vmatprep.subr.mxu0 0.0
    %154 = vmatpush1.msra.mxu0 %v122
    %155 = vmatprep.subr.mxu0 0.0
    %156 = vmatpush1.msra.mxu0 0.0
    %157 = vmatprep.subr.mxu0 0.0
    %158 = vmatpush1.msra.mxu0 0.0
    %159 = vmatprep.subr.mxu0 0.0
    %160 = vmatpush1.msra.mxu0 0.0
    %161 = vmatprep.subr.mxu0 0.0
    %162 = vmatpush1.msra.mxu0 0.0
    %163 = vmatprep.subr.mxu0 0.0
    %164 = vmatpush1.msra.mxu0 0.0
    %165 = vmatprep.subr.mxu0 0.0
    %166 = vmatpush1.msra.mxu0 0.0
    %167 = vmatprep.subr.mxu0 0.0
    %168 = vmatpush1.msra.mxu0 0.0
    %169 = vmatprep.subr.mxu0 0.0
    %170 = vmatpush1.msra.mxu0 0.0
    %171 = vmatprep.subr.mxu0 0.0
    %172 = vmatpush1.msra.mxu0 0.0
    %173 = vmatprep.subr.mxu0 0.0
    %174 = vmatpush1.msra.mxu0 0.0
    %175 = vmatprep.subr.mxu0 0.0
    %176 = vmatpush1.msra.mxu0 0.0
    %177 = vmatprep.subr.mxu0 0.0
    %178 = vmatpush1.msra.mxu0 0.0
    %179 = vmatprep.subr.mxu0 0.0
    %180 = vmatpush1.msra.mxu0 0.0
    %181 = vmatprep.subr.mxu0 0.0
    %182 = vmatpush1.msra.mxu0 0.0
    %183 = vmatprep.subr.mxu0 0.0
    %184 = vmatpush1.msra.mxu0 0.0
    %185 = vmatprep.subr.mxu0 0.0
    %186 = vmatpush1.msra.mxu0 0.0
    %187 = vmatprep.mubr.f32.mxu0 0.0
    %188 = vmatmul.mubr.f32.gmra.mrb[0].mxu0 %v99
    %v189 = vpop.f32.mrb[0].mxu0
    %v190 = vadd.f32 0.0, %v189
    %v191 = vpop.f32.mrb[0].mxu0
    %192 = vmatprep.mubr.f32.mxu0 0.0
    %193 = vmatmul.mubr.f32.gmra.mrb[0].mxu0 %v100
    %v194 = vpop.f32.mrb[0].mxu0
    %v195 = vadd.f32 0.0, %v194
    %v196 = vpop.f32.mrb[0].mxu0
    %197 = vmatprep.mubr.f32.mxu0 0.0
    %198 = vmatmul.mubr.f32.gmra.mrb[0].mxu0 %v101
    %v199 = vpop.f32.mrb[0].mxu0
    %v200 = vadd.f32 0.0, %v199
    %v201 = vpop.f32.mrb[0].mxu0
    %202 = vmatprep.mubr.f32.mxu0 0.0
    %203 = vmatmul.mubr.f32.gmra.mrb[0].mxu0 %v102
    %v204 = vpop.f32.mrb[0].mxu0
    %v205 = vadd.f32 0.0, %v204
    %v206 = vpop.f32.mrb[0].mxu0
    %207 = vmatprep.mubr.f32.mxu0 0.0
    %208 = vmatmul.mubr.f32.gmra.mrb[0].mxu0 %v103
    %v209 = vpop.f32.mrb[0].mxu0
    %v210 = vadd.f32 0.0, %v209
    %v211 = vpop.f32.mrb[0].mxu0
    %212 = vmatprep.mubr.f32.mxu0 0.0
    %213 = vmatmul.mubr.f32.gmra.mrb[0].mxu0 %v104
    %v214 = vpop.f32.mrb[0].mxu0
    %v215 = vadd.f32 0.0, %v214
    %v216 = vpop.f32.mrb[0].mxu0
    %217 = vmatprep.mubr.f32.mxu0 0.0
    %218 = vmatmul.mubr.f32.gmra.mrb[0].mxu0 %v105
    %v219 = vpop.f32.mrb[0].mxu0
    %v220 = vadd.f32 0.0, %v219
    %v221 = vpop.f32.mrb[0].mxu0
    %222 = vmatprep.mubr.f32.mxu0 0.0
    %223 = vmatmul.mubr.f32.gmra.mrb[0].mxu0 %v106
    %v224 = vpop.f32.mrb[0].mxu0
    %v225 = vadd.f32 0.0, %v224
    %v226 = vpop.f32.mrb[0].mxu0
    %227 = vdwg.mxu0
    %228 = vst [vmem:[#allocation2] sm:$0xff] %v190
    %229 = vst [vmem:[#allocation2 + $0x8] sm:$0xff] %v195
    %230 = vst [vmem:[#allocation2 + $0x10] sm:$0xff] %v200
    %231 = vst [vmem:[#allocation2 + $0x18] sm:$0xff] %v205
    %232 = vst [vmem:[#allocation2 + $0x20] sm:$0xff] %v210
    %233 = vst [vmem:[#allocation2 + $0x28] sm:$0xff] %v215
    %234 = vst [vmem:[#allocation2 + $0x30] sm:$0xff] %v220
    %235 = vst [vmem:[#allocation2 + $0x38] sm:$0xff] %v225
    %v236 = vld [vmem:[%s1] sm:$0xff]
    %v237 = vld [vmem:[#allocation6] sm:$0xff]
    %v238 = vld [vmem:[#allocation6 + $0x8] sm:$0xff]
    %v239 = vld [vmem:[#allocation6 + $0x10] sm:$0xff]
    %v240 = vld [vmem:[#allocation6 + $0x18] sm:$0xff]
    %v241 = vld [vmem:[#allocation6 + $0x20] sm:$0xff]
    %v242 = vld [vmem:[#allocation6 + $0x28] sm:$0xff]
    %v243 = vld [vmem:[#allocation6 + $0x30] sm:$0xff]
    %v244 = vld [vmem:[#allocation6 + $0x38] sm:$0xff]
    %v245 = vld [vmem:[#allocation6 + $0x40] sm:$0xff]
    %v246 = vld [vmem:[#allocation6 + $0x48] sm:$0xff]
    %v247 = vld [vmem:[#allocation6 + $0x50] sm:$0xff]
    %v248 = vld [vmem:[#allocation6 + $0x58] sm:$0xff]
    %v249 = vld [vmem:[#allocation6 + $0x60] sm:$0xff]
    %v250 = vld [vmem:[#allocation6 + $0x68] sm:$0xff]
    %v251 = vld [vmem:[#allocation6 + $0x70] sm:$0xff]
    %v252 = vld [vmem:[#allocation6 + $0x78] sm:$0xff]
    %v253 = vld [vmem:[%s4] sm:$0x1]
    %v255 = vlaneseq
    %v256 = vshrl.u32 %v255, 7
    %v257 = vsub.s32 0, %v256
    %v258 = vrot.slane %v253, %v257
    %v260 = vld [vmem:[#allocation2] sm:$0xff]
    %261 = vmatprep.subr.mxu0 0.0
    %262 = vmatpush1.msra.mxu0 %v237
    %263 = vmatprep.subr.mxu0 0.0
    %264 = vmatpush1.msra.mxu0 %v238
    %265 = vmatprep.subr.mxu0 0.0
    %266 = vmatpush1.msra.mxu0 %v239
    %267 = vmatprep.subr.mxu0 0.0
    %268 = vmatpush1.msra.mxu0 %v240
    %269 = vmatprep.subr.mxu0 0.0
    %270 = vmatpush1.msra.mxu0 %v241
    %271 = vmatprep.subr.mxu0 0.0
    %272 = vmatpush1.msra.mxu0 %v242
    %273 = vmatprep.subr.mxu0 0.0
    %274 = vmatpush1.msra.mxu0 %v243
    %275 = vmatprep.subr.mxu0 0.0
    %276 = vmatpush1.msra.mxu0 %v244
    %277 = vmatprep.subr.mxu0 0.0
    %278 = vmatpush1.msra.mxu0 %v245
    %279 = vmatprep.subr.mxu0 0.0
    %280 = vmatpush1.msra.mxu0 %v246
    %281 = vmatprep.subr.mxu0 0.0
    %282 = vmatpush1.msra.mxu0 %v247
    %283 = vmatprep.subr.mxu0 0.0
    %284 = vmatpush1.msra.mxu0 %v248
    %285 = vmatprep.subr.mxu0 0.0
    %286 = vmatpush1.msra.mxu0 %v249
    %287 = vmatprep.subr.mxu0 0.0
    %288 = vmatpush1.msra.mxu0 %v250
    %289 = vmatprep.subr.mxu0 0.0
    %290 = vmatpush1.msra.mxu0 %v251
    %291 = vmatprep.subr.mxu0 0.0
    %292 = vmatpush1.msra.mxu0 %v252
    %293 = vmatprep.subr.mxu0 0.0
    %294 = vmatpush1.msra.mxu0 0.0
    %295 = vmatprep.subr.mxu0 0.0
    %296 = vmatpush1.msra.mxu0 0.0
    %297 = vmatprep.subr.mxu0 0.0
    %298 = vmatpush1.msra.mxu0 0.0
    %299 = vmatprep.subr.mxu0 0.0
    %300 = vmatpush1.msra.mxu0 0.0
    %301 = vmatprep.subr.mxu0 0.0
    %302 = vmatpush1.msra.mxu0 0.0
    %303 = vmatprep.subr.mxu0 0.0
    %304 = vmatpush1.msra.mxu0 0.0
    %305 = vmatprep.subr.mxu0 0.0
    %306 = vmatpush1.msra.mxu0 0.0
    %307 = vmatprep.subr.mxu0 0.0
    %308 = vmatpush1.msra.mxu0 0.0
    %309 = vmatprep.subr.mxu0 0.0
    %310 = vmatpush1.msra.mxu0 0.0
    %311 = vmatprep.subr.mxu0 0.0
    %312 = vmatpush1.msra.mxu0 0.0
    %313 = vmatprep.subr.mxu0 0.0
    %314 = vmatpush1.msra.mxu0 0.0
    %315 = vmatprep.subr.mxu0 0.0
    %316 = vmatpush1.msra.mxu0 0.0
    %317 = vmatprep.subr.mxu0 0.0
    %318 = vmatpush1.msra.mxu0 0.0
    %319 = vmatprep.subr.mxu0 0.0
    %320 = vmatpush1.msra.mxu0 0.0
    %321 = vmatprep.subr.mxu0 0.0
    %322 = vmatpush1.msra.mxu0 0.0
    %323 = vmatprep.subr.mxu0 0.0
    %324 = vmatpush1.msra.mxu0 0.0
    %325 = vmatprep.mubr.f32.mxu0 0.0
    %326 = vmatmul.mubr.f32.gmra.mrb[0].mxu0 0.0
    %v327 = vpop.f32.mrb[0].mxu0
    %v328 = vadd.f32 %v258, %v327
    %v329 = vpop.f32.mrb[0].mxu0
    %330 = vdwg.mxu0
    %v331 = vadd.f32 %v260, %v328
    %v332 = vxor.u32 %v331, 2147483648
    %v333 = vmul.f32 %v332, 1.442695
    %v334 = vpow.pop %v333
    %v335 = vadd.f32 %v334, 1.0
    %v336 = vrcp.pop %v335
    %v337 = vmul.f32 1.0, %v336
    %338 = vrot.lane.b32.xlu0 %v337, 64
    %v339 = vpop.permute.xlu0 %338
    %v340 = vmul.f32 %v339, %v328
    %v341 = vadd.f32 %v260, %v340
    %v342 = vtanh.pop %v341
    %343 = vrot.lane.b32.xlu0 %v337, 96
    %v344 = vpop.permute.xlu0 %343
    %345 = vrot.lane.b32.xlu0 %v342, 64
    %v346 = vpop.permute.xlu0 %345
    %v347 = vsub.f32 1.0, %v344
    %v348 = vmul.f32 %v347, %v346
    %v349 = vmul.f32 %v344, 0.0
    %v350 = vadd.f32 %v348, %v349
    %vm351 = vcmp.gt.s32.totalorder %v236, 0
    %v352 = vsel %vm351, 1, 0
    %353 = vset.pattern.permute.xlu0 0
    %354 = vperm.xlu0 %353, %v352
    %v355 = vpop.permute.xlu0 %354
    %vm356 = vcmp.eq.s32.totalorder %v355, 1
    %v357 = vsel %vm356, %v350, 0.0
    %s358 = scalar_lea.vmem [#allocation2], 8
    %v359 = vld [vmem:[%s358] sm:$0xff]
    %360 = vmatprep.subr.mxu0 0.0
    %361 = vmatpush1.msra.mxu0 %v237
    %362 = vmatprep.subr.mxu0 0.0
    %363 = vmatpush1.msra.mxu0 %v238
    %364 = vmatprep.subr.mxu0 0.0
    %365 = vmatpush1.msra.mxu0 %v239
    %366 = vmatprep.subr.mxu0 0.0
    %367 = vmatpush1.msra.mxu0 %v240
    %368 = vmatprep.subr.mxu0 0.0
    %369 = vmatpush1.msra.mxu0 %v241
    %370 = vmatprep.subr.mxu0 0.0
    %371 = vmatpush1.msra.mxu0 %v242
    %372 = vmatprep.subr.mxu0 0.0
    %373 = vmatpush1.msra.mxu0 %v243
    %374 = vmatprep.subr.mxu0 0.0
    %375 = vmatpush1.msra.mxu0 %v244
    %376 = vmatprep.subr.mxu0 0.0
    %377 = vmatpush1.msra.mxu0 %v245
    %378 = vmatprep.subr.mxu0 0.0
    %379 = vmatpush1.msra.mxu0 %v246
    %380 = vmatprep.subr.mxu0 0.0
    %381 = vmatpush1.msra.mxu0 %v247
    %382 = vmatprep.subr.mxu0 0.0
    %383 = vmatpush1.msra.mxu0 %v248
    %384 = vmatprep.subr.mxu0 0.0
    %385 = vmatpush1.msra.mxu0 %v249
    %386 = vmatprep.subr.mxu0 0.0
    %387 = vmatpush1.msra.mxu0 %v250
    %388 = vmatprep.subr.mxu0 0.0
    %389 = vmatpush1.msra.mxu0 %v251
    %390 = vmatprep.subr.mxu0 0.0
    %391 = vmatpush1.msra.mxu0 %v252
    %392 = vmatprep.subr.mxu0 0.0
    %393 = vmatpush1.msra.mxu0 0.0
    %394 = vmatprep.subr.mxu0 0.0
    %395 = vmatpush1.msra.mxu0 0.0
    %396 = vmatprep.subr.mxu0 0.0
    %397 = vmatpush1.msra.mxu0 0.0
    %398 = vmatprep.subr.mxu0 0.0
    %399 = vmatpush1.msra.mxu0 0.0
    %400 = vmatprep.subr.mxu0 0.0
    %401 = vmatpush1.msra.mxu0 0.0
    %402 = vmatprep.subr.mxu0 0.0
    %403 = vmatpush1.msra.mxu0 0.0
    %404 = vmatprep.subr.mxu0 0.0
    %405 = vmatpush1.msra.mxu0 0.0
    %406 = vmatprep.subr.mxu0 0.0
    %407 = vmatpush1.msra.mxu0 0.0
    %408 = vmatprep.subr.mxu0 0.0
    %409 = vmatpush1.msra.mxu0 0.0
    %410 = vmatprep.subr.mxu0 0.0
    %411 = vmatpush1.msra.mxu0 0.0
    %412 = vmatprep.subr.mxu0 0.0
    %413 = vmatpush1.msra.mxu0 0.0
    %414 = vmatprep.subr.mxu0 0.0
    %415 = vmatpush1.msra.mxu0 0.0
    %416 = vmatprep.subr.mxu0 0.0
    %417 = vmatpush1.msra.mxu0 0.0
    %418 = vmatprep.subr.mxu0 0.0
    %419 = vmatpush1.msra.mxu0 0.0
    %420 = vmatprep.subr.mxu0 0.0
    %421 = vmatpush1.msra.mxu0 0.0
    %422 = vmatprep.subr.mxu0 0.0
    %423 = vmatpush1.msra.mxu0 0.0
    %424 = vmatprep.mubr.f32.mxu0 0.0
    %425 = vmatmul.mubr.f32.gmra.mrb[0].mxu0 %v357
    %v426 = vpop.f32.mrb[0].mxu0
    %v427 = vadd.f32 %v258, %v426
    %v428 = vpop.f32.mrb[0].mxu0
    %429 = vdwg.mxu0
    %v430 = vadd.f32 %v359, %v427
    %v431 = vxor.u32 %v430, 2147483648
    %v432 = vmul.f32 %v431, 1.442695
    %v433 = vpow.pop %v432
    %v434 = vadd.f32 %v433, 1.0
    %v435 = vrcp.pop %v434
    %v436 = vmul.f32 1.0, %v435
    %437 = vrot.lane.b32.xlu0 %v436, 64
    %v438 = vpop.permute.xlu0 %437
    %v439 = vmul.f32 %v438, %v427
    %v440 = vadd.f32 %v359, %v439
    %v441 = vtanh.pop %v440
    %442 = vrot.lane.b32.xlu0 %v436, 96
    %v443 = vpop.permute.xlu0 %442
    %444 = vrot.lane.b32.xlu0 %v441, 64
    %v445 = vpop.permute.xlu0 %444
    %v446 = vsub.f32 1.0, %v443
    %v447 = vmul.f32 %v446, %v445
    %v448 = vmul.f32 %v443, %v357
    %v449 = vadd.f32 %v447, %v448
    %vm450 = vcmp.gt.s32.totalorder %v236, 1
    %v451 = vsel %vm450, 1, 0
    %452 = vset.pattern.permute.xlu0 0
    %453 = vperm.xlu0 %452, %v451
    %v454 = vpop.permute.xlu0 %453
    %vm455 = vcmp.eq.s32.totalorder %v454, 1
    %v456 = vsel %vm455, %v449, %v357
    %s457 = scalar_lea.vmem [#allocation2], 16
    %v458 = vld [vmem:[%s457] sm:$0xff]
    %459 = vmatprep.subr.mxu0 0.0
    %460 = vmatpush1.msra.mxu0 %v237
    %461 = vmatprep.subr.mxu0 0.0
    %462 = vmatpush1.msra.mxu0 %v238
    %463 = vmatprep.subr.mxu0 0.0
    %464 = vmatpush1.msra.mxu0 %v239
    %465 = vmatprep.subr.mxu0 0.0
    %466 = vmatpush1.msra.mxu0 %v240
    %467 = vmatprep.subr.mxu0 0.0
    %468 = vmatpush1.msra.mxu0 %v241
    %469 = vmatprep.subr.mxu0 0.0
    %470 = vmatpush1.msra.mxu0 %v242
    %471 = vmatprep.subr.mxu0 0.0
    %472 = vmatpush1.msra.mxu0 %v243
    %473 = vmatprep.subr.mxu0 0.0
    %474 = vmatpush1.msra.mxu0 %v244
    %475 = vmatprep.subr.mxu0 0.0
    %476 = vmatpush1.msra.mxu0 %v245
    %477 = vmatprep.subr.mxu0 0.0
    %478 = vmatpush1.msra.mxu0 %v246
    %479 = vmatprep.subr.mxu0 0.0
    %480 = vmatpush1.msra.mxu0 %v247
    %481 = vmatprep.subr.mxu0 0.0
    %482 = vmatpush1.msra.mxu0 %v248
    %483 = vmatprep.subr.mxu0 0.0
    %484 = vmatpush1.msra.mxu0 %v249
    %485 = vmatprep.subr.mxu0 0.0
    %486 = vmatpush1.msra.mxu0 %v250
    %487 = vmatprep.subr.mxu0 0.0
    %488 = vmatpush1.msra.mxu0 %v251
    %489 = vmatprep.subr.mxu0 0.0
    %490 = vmatpush1.msra.mxu0 %v252
    %491 = vmatprep.subr.mxu0 0.0
    %492 = vmatpush1.msra.mxu0 0.0
    %493 = vmatprep.subr.mxu0 0.0
    %494 = vmatpush1.msra.mxu0 0.0
    %495 = vmatprep.subr.mxu0 0.0
    %496 = vmatpush1.msra.mxu0 0.0
    %497 = vmatprep.subr.mxu0 0.0
    %498 = vmatpush1.msra.mxu0 0.0
    %499 = vmatprep.subr.mxu0 0.0
    %500 = vmatpush1.msra.mxu0 0.0
    %501 = vmatprep.subr.mxu0 0.0
    %502 = vmatpush1.msra.mxu0 0.0
    %503 = vmatprep.subr.mxu0 0.0
    %504 = vmatpush1.msra.mxu0 0.0
    %505 = vmatprep.subr.mxu0 0.0
    %506 = vmatpush1.msra.mxu0 0.0
    %507 = vmatprep.subr.mxu0 0.0
    %508 = vmatpush1.msra.mxu0 0.0
    %509 = vmatprep.subr.mxu0 0.0
    %510 = vmatpush1.msra.mxu0 0.0
    %511 = vmatprep.subr.mxu0 0.0
    %512 = vmatpush1.msra.mxu0 0.0
    %513 = vmatprep.subr.mxu0 0.0
    %514 = vmatpush1.msra.mxu0 0.0
    %515 = vmatprep.subr.mxu0 0.0
    %516 = vmatpush1.msra.mxu0 0.0
    %517 = vmatprep.subr.mxu0 0.0
    %518 = vmatpush1.msra.mxu0 0.0
    %519 = vmatprep.subr.mxu0 0.0
    %520 = vmatpush1.msra.mxu0 0.0
    %521 = vmatprep.subr.mxu0 0.0
    %522 = vmatpush1.msra.mxu0 0.0
    %523 = vmatprep.mubr.f32.mxu0 0.0
    %524 = vmatmul.mubr.f32.gmra.mrb[0].mxu0 %v456
    %v525 = vpop.f32.mrb[0].mxu0
    %v526 = vadd.f32 %v258, %v525
    %v527 = vpop.f32.mrb[0].mxu0
    %528 = vdwg.mxu0
    %v529 = vadd.f32 %v458, %v526
    %v530 = vxor.u32 %v529, 2147483648
    %v531 = vmul.f32 %v530, 1.442695
    %v532 = vpow.pop %v531
    %v533 = vadd.f32 %v532, 1.0
    %v534 = vrcp.pop %v533
    %v535 = vmul.f32 1.0, %v534
    %536 = vrot.lane.b32.xlu0 %v535, 64
    %v537 = vpop.permute.xlu0 %536
    %v538 = vmul.f32 %v537, %v526
    %v539 = vadd.f32 %v458, %v538
    %v540 = vtanh.pop %v539
    %541 = vrot.lane.b32.xlu0 %v535, 96
    %v542 = vpop.permute.xlu0 %541
    %543 = vrot.lane.b32.xlu0 %v540, 64
    %v544 = vpop.permute.xlu0 %543
    %v545 = vsub.f32 1.0, %v542
    %v546 = vmul.f32 %v545, %v544
    %v547 = vmul.f32 %v542, %v456
    %v548 = vadd.f32 %v546, %v547
    %vm549 = vcmp.gt.s32.totalorder %v236, 2
    %v550 = vsel %vm549, 1, 0
    %551 = vset.pattern.permute.xlu0 0
    %552 = vperm.xlu0 %551, %v550
    %v553 = vpop.permute.xlu0 %552
    %vm554 = vcmp.eq.s32.totalorder %v553, 1
    %v555 = vsel %vm554, %v548, %v456
    %s556 = scalar_lea.vmem [#allocation2], 24
    %v557 = vld [vmem:[%s556] sm:$0xff]
    %558 = vmatprep.subr.mxu0 0.0
    %559 = vmatpush1.msra.mxu0 %v237
    %560 = vmatprep.subr.mxu0 0.0
    %561 = vmatpush1.msra.mxu0 %v238
    %562 = vmatprep.subr.mxu0 0.0
    %563 = vmatpush1.msra.mxu0 %v239
    %564 = vmatprep.subr.mxu0 0.0
    %565 = vmatpush1.msra.mxu0 %v240
    %566 = vmatprep.subr.mxu0 0.0
    %567 = vmatpush1.msra.mxu0 %v241
    %568 = vmatprep.subr.mxu0 0.0
    %569 = vmatpush1.msra.mxu0 %v242
    %570 = vmatprep.subr.mxu0 0.0
    %571 = vmatpush1.msra.mxu0 %v243
    %572 = vmatprep.subr.mxu0 0.0
    %573 = vmatpush1.msra.mxu0 %v244
    %574 = vmatprep.subr.mxu0 0.0
    %575 = vmatpush1.msra.mxu0 %v245
    %576 = vmatprep.subr.mxu0 0.0
    %577 = vmatpush1.msra.mxu0 %v246
    %578 = vmatprep.subr.mxu0 0.0
    %579 = vmatpush1.msra.mxu0 %v247
    %580 = vmatprep.subr.mxu0 0.0
    %581 = vmatpush1.msra.mxu0 %v248
    %582 = vmatprep.subr.mxu0 0.0
    %583 = vmatpush1.msra.mxu0 %v249
    %584 = vmatprep.subr.mxu0 0.0
    %585 = vmatpush1.msra.mxu0 %v250
    %586 = vmatprep.subr.mxu0 0.0
    %587 = vmatpush1.msra.mxu0 %v251
    %588 = vmatprep.subr.mxu0 0.0
    %589 = vmatpush1.msra.mxu0 %v252
    %590 = vmatprep.subr.mxu0 0.0
    %591 = vmatpush1.msra.mxu0 0.0
    %592 = vmatprep.subr.mxu0 0.0
    %593 = vmatpush1.msra.mxu0 0.0
    %594 = vmatprep.subr.mxu0 0.0
    %595 = vmatpush1.msra.mxu0 0.0
    %596 = vmatprep.subr.mxu0 0.0
    %597 = vmatpush1.msra.mxu0 0.0
    %598 = vmatprep.subr.mxu0 0.0
    %599 = vmatpush1.msra.mxu0 0.0
    %600 = vmatprep.subr.mxu0 0.0
    %601 = vmatpush1.msra.mxu0 0.0
    %602 = vmatprep.subr.mxu0 0.0
    %603 = vmatpush1.msra.mxu0 0.0
    %604 = vmatprep.subr.mxu0 0.0
    %605 = vmatpush1.msra.mxu0 0.0
    %606 = vmatprep.subr.mxu0 0.0
    %607 = vmatpush1.msra.mxu0 0.0
    %608 = vmatprep.subr.mxu0 0.0
    %609 = vmatpush1.msra.mxu0 0.0
    %610 = vmatprep.subr.mxu0 0.0
    %611 = vmatpush1.msra.mxu0 0.0
    %612 = vmatprep.subr.mxu0 0.0
    %613 = vmatpush1.msra.mxu0 0.0
    %614 = vmatprep.subr.mxu0 0.0
    %615 = vmatpush1.msra.mxu0 0.0
    %616 = vmatprep.subr.mxu0 0.0
    %617 = vmatpush1.msra.mxu0 0.0
    %618 = vmatprep.subr.mxu0 0.0
    %619 = vmatpush1.msra.mxu0 0.0
    %620 = vmatprep.subr.mxu0 0.0
    %621 = vmatpush1.msra.mxu0 0.0
    %622 = vmatprep.mubr.f32.mxu0 0.0
    %623 = vmatmul.mubr.f32.gmra.mrb[0].mxu0 %v555
    %v624 = vpop.f32.mrb[0].mxu0
    %v625 = vadd.f32 %v258, %v624
    %v626 = vpop.f32.mrb[0].mxu0
    %627 = vdwg.mxu0
    %v628 = vadd.f32 %v557, %v625
    %v629 = vxor.u32 %v628, 2147483648
    %v630 = vmul.f32 %v629, 1.442695
    %v631 = vpow.pop %v630
    %v632 = vadd.f32 %v631, 1.0
    %v633 = vrcp.pop %v632
    %v634 = vmul.f32 1.0, %v633
    %635 = vrot.lane.b32.xlu0 %v634, 64
    %v636 = vpop.permute.xlu0 %635
    %v637 = vmul.f32 %v636, %v625
    %v638 = vadd.f32 %v557, %v637
    %v639 = vtanh.pop %v638
    %640 = vrot.lane.b32.xlu0 %v634, 96
    %v641 = vpop.permute.xlu0 %640
    %642 = vrot.lane.b32.xlu0 %v639, 64
    %v643 = vpop.permute.xlu0 %642
    %v644 = vsub.f32 1.0, %v641
    %v645 = vmul.f32 %v644, %v643
    %v646 = vmul.f32 %v641, %v555
    %v647 = vadd.f32 %v645, %v646
    %vm648 = vcmp.gt.s32.totalorder %v236, 3
    %v649 = vsel %vm648, 1, 0
    %650 = vset.pattern.permute.xlu0 0
    %651 = vperm.xlu0 %650, %v649
    %v652 = vpop.permute.xlu0 %651
    %vm653 = vcmp.eq.s32.totalorder %v652, 1
    %v654 = vsel %vm653, %v647, %v555
    %s655 = scalar_lea.vmem [#allocation2], 32
    %v656 = vld [vmem:[%s655] sm:$0xff]
    %657 = vmatprep.subr.mxu0 0.0
    %658 = vmatpush1.msra.mxu0 %v237
    %659 = vmatprep.subr.mxu0 0.0
    %660 = vmatpush1.msra.mxu0 %v238
    %661 = vmatprep.subr.mxu0 0.0
    %662 = vmatpush1.msra.mxu0 %v239
    %663 = vmatprep.subr.mxu0 0.0
    %664 = vmatpush1.msra.mxu0 %v240
    %665 = vmatprep.subr.mxu0 0.0
    %666 = vmatpush1.msra.mxu0 %v241
    %667 = vmatprep.subr.mxu0 0.0
    %668 = vmatpush1.msra.mxu0 %v242
    %669 = vmatprep.subr.mxu0 0.0
    %670 = vmatpush1.msra.mxu0 %v243
    %671 = vmatprep.subr.mxu0 0.0
    %672 = vmatpush1.msra.mxu0 %v244
    %673 = vmatprep.subr.mxu0 0.0
    %674 = vmatpush1.msra.mxu0 %v245
    %675 = vmatprep.subr.mxu0 0.0
    %676 = vmatpush1.msra.mxu0 %v246
    %677 = vmatprep.subr.mxu0 0.0
    %678 = vmatpush1.msra.mxu0 %v247
    %679 = vmatprep.subr.mxu0 0.0
    %680 = vmatpush1.msra.mxu0 %v248
    %681 = vmatprep.subr.mxu0 0.0
    %682 = vmatpush1.msra.mxu0 %v249
    %683 = vmatprep.subr.mxu0 0.0
    %684 = vmatpush1.msra.mxu0 %v250
    %685 = vmatprep.subr.mxu0 0.0
    %686 = vmatpush1.msra.mxu0 %v251
    %687 = vmatprep.subr.mxu0 0.0
    %688 = vmatpush1.msra.mxu0 %v252
    %689 = vmatprep.subr.mxu0 0.0
    %690 = vmatpush1.msra.mxu0 0.0
    %691 = vmatprep.subr.mxu0 0.0
    %692 = vmatpush1.msra.mxu0 0.0
    %693 = vmatprep.subr.mxu0 0.0
    %694 = vmatpush1.msra.mxu0 0.0
    %695 = vmatprep.subr.mxu0 0.0
    %696 = vmatpush1.msra.mxu0 0.0
    %697 = vmatprep.subr.mxu0 0.0
    %698 = vmatpush1.msra.mxu0 0.0
    %699 = vmatprep.subr.mxu0 0.0
    %700 = vmatpush1.msra.mxu0 0.0
    %701 = vmatprep.subr.mxu0 0.0
    %702 = vmatpush1.msra.mxu0 0.0
    %703 = vmatprep.subr.mxu0 0.0
    %704 = vmatpush1.msra.mxu0 0.0
    %705 = vmatprep.subr.mxu0 0.0
    %706 = vmatpush1.msra.mxu0 0.0
    %707 = vmatprep.subr.mxu0 0.0
    %708 = vmatpush1.msra.mxu0 0.0
    %709 = vmatprep.subr.mxu0 0.0
    %710 = vmatpush1.msra.mxu0 0.0
    %711 = vmatprep.subr.mxu0 0.0
    %712 = vmatpush1.msra.mxu0 0.0
    %713 = vmatprep.subr.mxu0 0.0
    %714 = vmatpush1.msra.mxu0 0.0
    %715 = vmatprep.subr.mxu0 0.0
    %716 = vmatpush1.msra.mxu0 0.0
    %717 = vmatprep.subr.mxu0 0.0
    %718 = vmatpush1.msra.mxu0 0.0
    %719 = vmatprep.subr.mxu0 0.0
    %720 = vmatpush1.msra.mxu0 0.0
    %721 = vmatprep.mubr.f32.mxu0 0.0
    %722 = vmatmul.mubr.f32.gmra.mrb[0].mxu0 %v654
    %v723 = vpop.f32.mrb[0].mxu0
    %v724 = vadd.f32 %v258, %v723
    %v725 = vpop.f32.mrb[0].mxu0
    %726 = vdwg.mxu0
    %v727 = vadd.f32 %v656, %v724
    %v728 = vxor.u32 %v727, 2147483648
    %v729 = vmul.f32 %v728, 1.442695
    %v730 = vpow.pop %v729
    %v731 = vadd.f32 %v730, 1.0
    %v732 = vrcp.pop %v731
    %v733 = vmul.f32 1.0, %v732
    %734 = vrot.lane.b32.xlu0 %v733, 64
    %v735 = vpop.permute.xlu0 %734
    %v736 = vmul.f32 %v735, %v724
    %v737 = vadd.f32 %v656, %v736
    %v738 = vtanh.pop %v737
    %739 = vrot.lane.b32.xlu0 %v733, 96
    %v740 = vpop.permute.xlu0 %739
    %741 = vrot.lane.b32.xlu0 %v738, 64
    %v742 = vpop.permute.xlu0 %741
    %v743 = vsub.f32 1.0, %v740
    %v744 = vmul.f32 %v743, %v742
    %v745 = vmul.f32 %v740, %v654
    %v746 = vadd.f32 %v744, %v745
    %vm747 = vcmp.gt.s32.totalorder %v236, 4
    %v748 = vsel %vm747, 1, 0
    %749 = vset.pattern.permute.xlu0 0
    %750 = vperm.xlu0 %749, %v748
    %v751 = vpop.permute.xlu0 %750
    %vm752 = vcmp.eq.s32.totalorder %v751, 1
    %v753 = vsel %vm752, %v746, %v654
    %s754 = scalar_lea.vmem [#allocation2], 40
    %v755 = vld [vmem:[%s754] sm:$0xff]
    %756 = vmatprep.subr.mxu0 0.0
    %757 = vmatpush1.msra.mxu0 %v237
    %758 = vmatprep.subr.mxu0 0.0
    %759 = vmatpush1.msra.mxu0 %v238
    %760 = vmatprep.subr.mxu0 0.0
    %761 = vmatpush1.msra.mxu0 %v239
    %762 = vmatprep.subr.mxu0 0.0
    %763 = vmatpush1.msra.mxu0 %v240
    %764 = vmatprep.subr.mxu0 0.0
    %765 = vmatpush1.msra.mxu0 %v241
    %766 = vmatprep.subr.mxu0 0.0
    %767 = vmatpush1.msra.mxu0 %v242
    %768 = vmatprep.subr.mxu0 0.0
    %769 = vmatpush1.msra.mxu0 %v243
    %770 = vmatprep.subr.mxu0 0.0
    %771 = vmatpush1.msra.mxu0 %v244
    %772 = vmatprep.subr.mxu0 0.0
    %773 = vmatpush1.msra.mxu0 %v245
    %774 = vmatprep.subr.mxu0 0.0
    %775 = vmatpush1.msra.mxu0 %v246
    %776 = vmatprep.subr.mxu0 0.0
    %777 = vmatpush1.msra.mxu0 %v247
    %778 = vmatprep.subr.mxu0 0.0
    %779 = vmatpush1.msra.mxu0 %v248
    %780 = vmatprep.subr.mxu0 0.0
    %781 = vmatpush1.msra.mxu0 %v249
    %782 = vmatprep.subr.mxu0 0.0
    %783 = vmatpush1.msra.mxu0 %v250
    %784 = vmatprep.subr.mxu0 0.0
    %785 = vmatpush1.msra.mxu0 %v251
    %786 = vmatprep.subr.mxu0 0.0
    %787 = vmatpush1.msra.mxu0 %v252
    %788 = vmatprep.subr.mxu0 0.0
    %789 = vmatpush1.msra.mxu0 0.0
    %790 = vmatprep.subr.mxu0 0.0
    %791 = vmatpush1.msra.mxu0 0.0
    %792 = vmatprep.subr.mxu0 0.0
    %793 = vmatpush1.msra.mxu0 0.0
    %794 = vmatprep.subr.mxu0 0.0
    %795 = vmatpush1.msra.mxu0 0.0
    %796 = vmatprep.subr.mxu0 0.0
    %797 = vmatpush1.msra.mxu0 0.0
    %798 = vmatprep.subr.mxu0 0.0
    %799 = vmatpush1.msra.mxu0 0.0
    %800 = vmatprep.subr.mxu0 0.0
    %801 = vmatpush1.msra.mxu0 0.0
    %802 = vmatprep.subr.mxu0 0.0
    %803 = vmatpush1.msra.mxu0 0.0
    %804 = vmatprep.subr.mxu0 0.0
    %805 = vmatpush1.msra.mxu0 0.0
    %806 = vmatprep.subr.mxu0 0.0
    %807 = vmatpush1.msra.mxu0 0.0
    %808 = vmatprep.subr.mxu0 0.0
    %809 = vmatpush1.msra.mxu0 0.0
    %810 = vmatprep.subr.mxu0 0.0
    %811 = vmatpush1.msra.mxu0 0.0
    %812 = vmatprep.subr.mxu0 0.0
    %813 = vmatpush1.msra.mxu0 0.0
    %814 = vmatprep.subr.mxu0 0.0
    %815 = vmatpush1.msra.mxu0 0.0
    %816 = vmatprep.subr.mxu0 0.0
    %817 = vmatpush1.msra.mxu0 0.0
    %818 = vmatprep.subr.mxu0 0.0
    %819 = vmatpush1.msra.mxu0 0.0
    %820 = vmatprep.mubr.f32.mxu0 0.0
    %821 = vmatmul.mubr.f32.gmra.mrb[0].mxu0 %v753
    %v822 = vpop.f32.mrb[0].mxu0
    %v823 = vadd.f32 %v258, %v822
    %v824 = vpop.f32.mrb[0].mxu0
    %825 = vdwg.mxu0
    %v826 = vadd.f32 %v755, %v823
    %v827 = vxor.u32 %v826, 2147483648
    %v828 = vmul.f32 %v827, 1.442695
    %v829 = vpow.pop %v828
    %v830 = vadd.f32 %v829, 1.0
    %v831 = vrcp.pop %v830
    %v832 = vmul.f32 1.0, %v831
    %833 = vrot.lane.b32.xlu0 %v832, 64
    %v834 = vpop.permute.xlu0 %833
    %v835 = vmul.f32 %v834, %v823
    %v836 = vadd.f32 %v755, %v835
    %v837 = vtanh.pop %v836
    %838 = vrot.lane.b32.xlu0 %v832, 96
    %v839 = vpop.permute.xlu0 %838
    %840 = vrot.lane.b32.xlu0 %v837, 64
    %v841 = vpop.permute.xlu0 %840
    %v842 = vsub.f32 1.0, %v839
    %v843 = vmul.f32 %v842, %v841
    %v844 = vmul.f32 %v839, %v753
    %v845 = vadd.f32 %v843, %v844
    %vm846 = vcmp.gt.s32.totalorder %v236, 5
    %v847 = vsel %vm846, 1, 0
    %848 = vset.pattern.permute.xlu0 0
    %849 = vperm.xlu0 %848, %v847
    %v850 = vpop.permute.xlu0 %849
    %vm851 = vcmp.eq.s32.totalorder %v850, 1
    %v852 = vsel %vm851, %v845, %v753
    %s853 = scalar_lea.vmem [#allocation2], 48
    %v854 = vld [vmem:[%s853] sm:$0xff]
    %855 = vmatprep.subr.mxu0 0.0
    %856 = vmatpush1.msra.mxu0 %v237
    %857 = vmatprep.subr.mxu0 0.0
    %858 = vmatpush1.msra.mxu0 %v238
    %859 = vmatprep.subr.mxu0 0.0
    %860 = vmatpush1.msra.mxu0 %v239
    %861 = vmatprep.subr.mxu0 0.0
    %862 = vmatpush1.msra.mxu0 %v240
    %863 = vmatprep.subr.mxu0 0.0
    %864 = vmatpush1.msra.mxu0 %v241
    %865 = vmatprep.subr.mxu0 0.0
    %866 = vmatpush1.msra.mxu0 %v242
    %867 = vmatprep.subr.mxu0 0.0
    %868 = vmatpush1.msra.mxu0 %v243
    %869 = vmatprep.subr.mxu0 0.0
    %870 = vmatpush1.msra.mxu0 %v244
    %871 = vmatprep.subr.mxu0 0.0
    %872 = vmatpush1.msra.mxu0 %v245
    %873 = vmatprep.subr.mxu0 0.0
    %874 = vmatpush1.msra.mxu0 %v246
    %875 = vmatprep.subr.mxu0 0.0
    %876 = vmatpush1.msra.mxu0 %v247
    %877 = vmatprep.subr.mxu0 0.0
    %878 = vmatpush1.msra.mxu0 %v248
    %879 = vmatprep.subr.mxu0 0.0
    %880 = vmatpush1.msra.mxu0 %v249
    %881 = vmatprep.subr.mxu0 0.0
    %882 = vmatpush1.msra.mxu0 %v250
    %883 = vmatprep.subr.mxu0 0.0
    %884 = vmatpush1.msra.mxu0 %v251
    %885 = vmatprep.subr.mxu0 0.0
    %886 = vmatpush1.msra.mxu0 %v252
    %887 = vmatprep.subr.mxu0 0.0
    %888 = vmatpush1.msra.mxu0 0.0
    %889 = vmatprep.subr.mxu0 0.0
    %890 = vmatpush1.msra.mxu0 0.0
    %891 = vmatprep.subr.mxu0 0.0
    %892 = vmatpush1.msra.mxu0 0.0
    %893 = vmatprep.subr.mxu0 0.0
    %894 = vmatpush1.msra.mxu0 0.0
    %895 = vmatprep.subr.mxu0 0.0
    %896 = vmatpush1.msra.mxu0 0.0
    %897 = vmatprep.subr.mxu0 0.0
    %898 = vmatpush1.msra.mxu0 0.0
    %899 = vmatprep.subr.mxu0 0.0
    %900 = vmatpush1.msra.mxu0 0.0
    %901 = vmatprep.subr.mxu0 0.0
    %902 = vmatpush1.msra.mxu0 0.0
    %903 = vmatprep.subr.mxu0 0.0
    %904 = vmatpush1.msra.mxu0 0.0
    %905 = vmatprep.subr.mxu0 0.0
    %906 = vmatpush1.msra.mxu0 0.0
    %907 = vmatprep.subr.mxu0 0.0
    %908 = vmatpush1.msra.mxu0 0.0
    %909 = vmatprep.subr.mxu0 0.0
    %910 = vmatpush1.msra.mxu0 0.0
    %911 = vmatprep.subr.mxu0 0.0
    %912 = vmatpush1.msra.mxu0 0.0
    %913 = vmatprep.subr.mxu0 0.0
    %914 = vmatpush1.msra.mxu0 0.0
    %915 = vmatprep.subr.mxu0 0.0
    %916 = vmatpush1.msra.mxu0 0.0
    %917 = vmatprep.subr.mxu0 0.0
    %918 = vmatpush1.msra.mxu0 0.0
    %919 = vmatprep.mubr.f32.mxu0 0.0
    %920 = vmatmul.mubr.f32.gmra.mrb[0].mxu0 %v852
    %v921 = vpop.f32.mrb[0].mxu0
    %v922 = vadd.f32 %v258, %v921
    %v923 = vpop.f32.mrb[0].mxu0
    %924 = vdwg.mxu0
    %v925 = vadd.f32 %v854, %v922
    %v926 = vxor.u32 %v925, 2147483648
    %v927 = vmul.f32 %v926, 1.442695
    %v928 = vpow.pop %v927
    %v929 = vadd.f32 %v928, 1.0
    %v930 = vrcp.pop %v929
    %v931 = vmul.f32 1.0, %v930
    %932 = vrot.lane.b32.xlu0 %v931, 64
    %v933 = vpop.permute.xlu0 %932
    %v934 = vmul.f32 %v933, %v922
    %v935 = vadd.f32 %v854, %v934
    %v936 = vtanh.pop %v935
    %937 = vrot.lane.b32.xlu0 %v931, 96
    %v938 = vpop.permute.xlu0 %937
    %939 = vrot.lane.b32.xlu0 %v936, 64
    %v940 = vpop.permute.xlu0 %939
    %v941 = vsub.f32 1.0, %v938
    %v942 = vmul.f32 %v941, %v940
    %v943 = vmul.f32 %v938, %v852
    %v944 = vadd.f32 %v942, %v943
    %vm945 = vcmp.gt.s32.totalorder %v236, 6
    %v946 = vsel %vm945, 1, 0
    %947 = vset.pattern.permute.xlu0 0
    %948 = vperm.xlu0 %947, %v946
    %v949 = vpop.permute.xlu0 %948
    %vm950 = vcmp.eq.s32.totalorder %v949, 1
    %v951 = vsel %vm950, %v944, %v852
    %s952 = scalar_lea.vmem [#allocation2], 56
    %v953 = vld [vmem:[%s952] sm:$0xff]
    %954 = vmatprep.subr.mxu0 0.0
    %955 = vmatpush1.msra.mxu0 %v237
    %956 = vmatprep.subr.mxu0 0.0
    %957 = vmatpush1.msra.mxu0 %v238
    %958 = vmatprep.subr.mxu0 0.0
    %959 = vmatpush1.msra.mxu0 %v239
    %960 = vmatprep.subr.mxu0 0.0
    %961 = vmatpush1.msra.mxu0 %v240
    %962 = vmatprep.subr.mxu0 0.0
    %963 = vmatpush1.msra.mxu0 %v241
    %964 = vmatprep.subr.mxu0 0.0
    %965 = vmatpush1.msra.mxu0 %v242
    %966 = vmatprep.subr.mxu0 0.0
    %967 = vmatpush1.msra.mxu0 %v243
    %968 = vmatprep.subr.mxu0 0.0
    %969 = vmatpush1.msra.mxu0 %v244
    %970 = vmatprep.subr.mxu0 0.0
    %971 = vmatpush1.msra.mxu0 %v245
    %972 = vmatprep.subr.mxu0 0.0
    %973 = vmatpush1.msra.mxu0 %v246
    %974 = vmatprep.subr.mxu0 0.0
    %975 = vmatpush1.msra.mxu0 %v247
    %976 = vmatprep.subr.mxu0 0.0
    %977 = vmatpush1.msra.mxu0 %v248
    %978 = vmatprep.subr.mxu0 0.0
    %979 = vmatpush1.msra.mxu0 %v249
    %980 = vmatprep.subr.mxu0 0.0
    %981 = vmatpush1.msra.mxu0 %v250
    %982 = vmatprep.subr.mxu0 0.0
    %983 = vmatpush1.msra.mxu0 %v251
    %984 = vmatprep.subr.mxu0 0.0
    %985 = vmatpush1.msra.mxu0 %v252
    %986 = vmatprep.subr.mxu0 0.0
    %987 = vmatpush1.msra.mxu0 0.0
    %988 = vmatprep.subr.mxu0 0.0
    %989 = vmatpush1.msra.mxu0 0.0
    %990 = vmatprep.subr.mxu0 0.0
    %991 = vmatpush1.msra.mxu0 0.0
    %992 = vmatprep.subr.mxu0 0.0
    %993 = vmatpush1.msra.mxu0 0.0
    %994 = vmatprep.subr.mxu0 0.0
    %995 = vmatpush1.msra.mxu0 0.0
    %996 = vmatprep.subr.mxu0 0.0
    %997 = vmatpush1.msra.mxu0 0.0
    %998 = vmatprep.subr.mxu0 0.0
    %999 = vmatpush1.msra.mxu0 0.0
    %1000 = vmatprep.subr.mxu0 0.0
    %1001 = vmatpush1.msra.mxu0 0.0
    %1002 = vmatprep.subr.mxu0 0.0
    %1003 = vmatpush1.msra.mxu0 0.0
    %1004 = vmatprep.subr.mxu0 0.0
    %1005 = vmatpush1.msra.mxu0 0.0
    %1006 = vmatprep.subr.mxu0 0.0
    %1007 = vmatpush1.msra.mxu0 0.0
    %1008 = vmatprep.subr.mxu0 0.0
    %1009 = vmatpush1.msra.mxu0 0.0
    %1010 = vmatprep.subr.mxu0 0.0
    %1011 = vmatpush1.msra.mxu0 0.0
    %1012 = vmatprep.subr.mxu0 0.0
    %1013 = vmatpush1.msra.mxu0 0.0
    %1014 = vmatprep.subr.mxu0 0.0
    %1015 = vmatpush1.msra.mxu0 0.0
    %1016 = vmatprep.subr.mxu0 0.0
    %1017 = vmatpush1.msra.mxu0 0.0
    %1018 = vmatprep.mubr.f32.mxu0 0.0
    %1019 = vmatmul.mubr.f32.gmra.mrb[0].mxu0 %v951
    %v1020 = vpop.f32.mrb[0].mxu0
    %v1021 = vadd.f32 %v258, %v1020
    %v1022 = vpop.f32.mrb[0].mxu0
    %1023 = vdwg.mxu0
    %v1024 = vadd.f32 %v953, %v1021
    %v1025 = vxor.u32 %v1024, 2147483648
    %v1026 = vmul.f32 %v1025, 1.442695
    %v1027 = vpow.pop %v1026
    %v1028 = vadd.f32 %v1027, 1.0
    %v1029 = vrcp.pop %v1028
    %v1030 = vmul.f32 1.0, %v1029
    %1031 = vrot.lane.b32.xlu0 %v1030, 64
    %v1032 = vpop.permute.xlu0 %1031
    %v1033 = vmul.f32 %v1032, %v1021
    %v1034 = vadd.f32 %v953, %v1033
    %v1035 = vtanh.pop %v1034
    %1036 = vrot.lane.b32.xlu0 %v1030, 96
    %v1037 = vpop.permute.xlu0 %1036
    %1038 = vrot.lane.b32.xlu0 %v1035, 64
    %v1039 = vpop.permute.xlu0 %1038
    %v1040 = vsub.f32 1.0, %v1037
    %v1041 = vmul.f32 %v1040, %v1039
    %v1042 = vmul.f32 %v1037, %v951
    %v1043 = vadd.f32 %v1041, %v1042
    %vm1044 = vcmp.gt.s32.totalorder %v236, 7
    %v1045 = vsel %vm1044, 1, 0
    %1046 = vset.pattern.permute.xlu0 0
    %1047 = vperm.xlu0 %1046, %v1045
    %v1048 = vpop.permute.xlu0 %1047
    %vm1049 = vcmp.eq.s32.totalorder %v1048, 1
    %v1050 = vsel %vm1049, %v1043, %v951
    %1051 = vst [vmem:[#allocation8] sm:$0xff] %v1050
    // Predicated region
    $region30: #{tpu_custom_call.1} parent=1 // pred_check
      _
    $region31: #{tpu_custom_call.1} parent=1 // pred_check_branch
      %1053 = sbr.rel (0) target = $region33
    $region32: #{tpu_custom_call.1} parent=1 // pred_region
      %s1055 = ssub.s32 128, 128
      %1056 = vsyncadd [#allocation5], %s1055
      %s1058 = sshll.u32 [#allocation8], 4
      %s1059 = int_to_ptr.vmem [resolvable:$true] %s1058
      %1061 = dma.vmem_to_hbm [thread:$0]  %s1059, 128, %s5, [#allocation5]
    $region33: #{tpu_custom_call.1} parent=1 // pred_fallthru
      _
    // Predicated region
    $region34: #{tpu_custom_call.1} parent=1 // pred_check
      _
    $region35: #{tpu_custom_call.1} parent=1 // pred_check_branch
      %1063 = sbr.rel (0) target = $region37
    $region36: #{tpu_custom_call.1} parent=1 // pred_region
      %1064 = dma.done [#allocation5], 128
    $region37: #{tpu_custom_call.1} parent=1 // pred_fallthru
      _
    %1065 = vsyncpa [#allocation4], 1
    %1066 = vsyncpa [#allocation7], 1
    %1067 = vsyncpa [#allocation5], 1

</llo_original>
